<compile_context>
chip_gen: v7x
topology: tpu7x:2x2x1
jax: 0.10.0
libtpu: 0.0.40
codegen_flags: <defaults>
</compile_context>

<pallas_src>
import functools
import math

import jax
import jax.numpy as jnp
from jax.experimental import pallas as pl
from jax.experimental.pallas import tpu as pltpu


def _cdiv(a, b):
    return -(-a // b)


def _round_up(a, b):
    return _cdiv(a, b) * b


# ---------------------------------------------------------------------------
# Device / capability helpers
# ---------------------------------------------------------------------------
def _tpu_vmem_capacity_bytes():
    try:
        return int(pltpu.get_tpu_info().vmem_capacity_bytes)
    except Exception:
        return 64 * 1024 * 1024        # conservative default (v7x per-TC VMEM)


def _num_tensorcores():
    try:
        info = pltpu.get_tpu_info()
        for name in ("num_tensorcores", "tensorcores_per_chip", "num_cores"):
            v = getattr(info, name, None)
            if v:
                return int(v)
    except Exception:
        pass
    try:
        if "v7" in jax.devices()[0].device_kind.lower():
            return 2
    except Exception:
        pass
    return 1


_SINGLE_BUF = None


def _single_buffer_supported():
    """Probe once whether pipeline_mode=pl.Buffered(1) lowers on this backend."""
    global _SINGLE_BUF
    if _SINGLE_BUF is not None:
        return _SINGLE_BUF
    try:
        def _copy(x_ref, o_ref):
            o_ref[...] = x_ref[...]

        spec = pl.BlockSpec((8, 128), lambda i: (0, 0),
                            pipeline_mode=pl.Buffered(1))
        out = pl.pallas_call(
            _copy,
            out_shape=jax.ShapeDtypeStruct((8, 128), jnp.float32),
            grid=(1,),
            in_specs=[spec],
            out_specs=pl.BlockSpec((8, 128), lambda i: (0, 0)),
        )(jnp.ones((8, 128), jnp.float32))
        jax.block_until_ready(out)
        _SINGLE_BUF = bool(jnp.all(out == 1.0))
    except Exception:
        _SINGLE_BUF = False
    return _SINGLE_BUF


def _const_spec(block_shape):
    """BlockSpec for a grid-invariant operand; single-buffered when supported."""
    idx = lambda *args: (0,) * len(block_shape)
    if _single_buffer_supported():
        return pl.BlockSpec(block_shape, idx, pipeline_mode=pl.Buffered(1))
    return pl.BlockSpec(block_shape, idx)


# ---------------------------------------------------------------------------
# Kernel 1: LayerNorm + multi-head self-attention + residual (nb batches/step)
# ---------------------------------------------------------------------------
def attn_block_kernel(x_ref, gamma_ref, beta_ref, wqkv_ref, bqkv_ref,
                      wo_ref, bo_ref, o_ref, *, eps, num_heads, head_dim):
    nb, s_len, d_model = x_ref.shape
    rows = nb * s_len
    x = x_ref[...].reshape(rows, d_model).astype(jnp.float32)

    # LayerNorm, fp32 statistics.
    mean = jnp.mean(x, axis=-1, keepdims=True)
    var = jnp.mean(x * x, axis=-1, keepdims=True) - mean * mean
    y = (x - mean) * jax.lax.rsqrt(var + eps) * gamma_ref[...] + beta_ref[...]

    cdt = wqkv_ref.dtype                      # bf16 MXU inputs, fp32 accumulate
    # Fused full-width QKV projection: (rows, D) @ (D, 3D).
    qkv = jnp.dot(y.astype(cdt), wqkv_ref[...],
                  preferred_element_type=jnp.float32) + bqkv_ref[...]
    q2 = qkv[:, :d_model]
    k2 = qkv[:, d_model:2 * d_model]
    v2 = qkv[:, 2 * d_model:]

    scale = 1.0 / math.sqrt(head_dim)
    head_outs = []
    for h in range(num_heads):                # per-head scores / PV only
        lo, hi = h * head_dim, (h + 1) * head_dim
        qh = (q2[:, lo:hi] * scale).reshape(nb, s_len, head_dim).astype(cdt)
        kh = k2[:, lo:hi].reshape(nb, s_len, head_dim).astype(cdt)
        vh = v2[:, lo:hi].reshape(nb, s_len, head_dim).astype(cdt)
        s = jnp.einsum("bqd,bkd->bqk", qh, kh,
                       preferred_element_type=jnp.float32)
        s = s - jnp.max(s, axis=-1, keepdims=True)
        p = jnp.exp(s)
        p = p * pl.reciprocal(jnp.sum(p, axis=-1, keepdims=True), approx=True)
        oh = jnp.einsum("bqk,bkd->bqd", p.astype(cdt), vh,
                        preferred_element_type=jnp.float32)
        head_outs.append(oh.reshape(rows, head_dim))

    # Concat heads (head-major, matches torch) + single fused output projection.
    ctx = jnp.concatenate(head_outs, axis=-1)                    # (rows, D)
    out = jnp.dot(ctx.astype(cdt), wo_ref[...],
                  preferred_element_type=jnp.float32) + bo_ref[...]

    # attn_dropout = 0; fused residual add.
    o_ref[...] = (out + x).reshape(nb, s_len, d_model).astype(o_ref.dtype)


def msa_block(x, gamma, beta, in_proj_w, in_proj_b, out_proj_w, out_proj_b,
              *, num_heads, eps=1e-5, param_dtype=jnp.bfloat16):
    """LayerNorm -> nn.MultiheadAttention(self-attn, batch_first) -> + x."""
    B, S, D = x.shape
    assert D % num_heads == 0
    dh = D // num_heads
    n_cores = _num_tensorcores()

    # Batches per grid step: fill the MXU M dimension (~256 rows) but expose at
    # least one grid step per TensorCore; nb must divide B.
    nb = max(1, min(B, 256 // max(1, S)))
    if n_cores > 1:
        nb = min(nb, max(1, _cdiv(B, n_cores)))
    while B % nb != 0:
        nb -= 1
    rows = nb * S
    # TODO(synk): for v7x with B == 1, add a second "parallel" grid axis over
    # query-row tiles so both TensorCores get work.

    # torch layouts: in_proj_w (3D, D), out_proj_w (D, D); transpose for x @ W.
    wqkv = in_proj_w.T.astype(param_dtype)                     # (D, 3D)
    bqkv = in_proj_b.reshape(1, 3 * D).astype(jnp.float32)
    wo = out_proj_w.T.astype(param_dtype)                      # (D, D)
    bo = out_proj_b.reshape(1, D).astype(jnp.float32)
    gamma2 = gamma.reshape(1, D).astype(jnp.float32)
    beta2 = beta.reshape(1, D).astype(jnp.float32)

    w_bytes = jnp.dtype(param_dtype).itemsize
    wbuf = 1 if _single_buffer_supported() else 2
    est = (wbuf * (3 * D * D + D * D) * w_bytes        # Wqkv + Wo
           + 2 * 2 * rows * D * x.dtype.itemsize       # x / out tiles, dbl-buffered
           + rows * 3 * D * 4                          # qkv fp32
           + 2 * rows * D * 4                          # y + ctx fp32
           + num_heads * nb * S * S * 4                # scores / probs
           + 7 * D * 4)                                # biases / gamma / beta
    cap = _tpu_vmem_capacity_bytes()
    vmem_limit = int(min(0.85 * cap, max(32 * 1024 * 1024, 1.5 * est)))

    cost = pl.CostEstimate(
        flops=B * (8 * S * D * D + 4 * S * S * D),
        transcendentals=B * num_heads * S * S,
        bytes_accessed=2 * B * S * D * x.dtype.itemsize + 4 * D * D * w_bytes)

    return pl.pallas_call(
        functools.partial(attn_block_kernel, eps=eps, num_heads=num_heads,
                          head_dim=dh),
        out_shape=jax.ShapeDtypeStruct((B, S, D), x.dtype),
        grid_spec=pltpu.PrefetchScalarGridSpec(
            num_scalar_prefetch=0,
            grid=(B // nb,),
            in_specs=[
                pl.BlockSpec((nb, S, D), lambda b: (b, 0, 0)),   # x tile
                _const_spec((1, D)),                             # gamma
                _const_spec((1, D)),                             # beta
                _const_spec((D, 3 * D)),                         # W_qkv (bf16)
                _const_spec((1, 3 * D)),                         # b_qkv
                _const_spec((D, D)),                             # W_o (bf16)
                _const_spec((1, D)),                             # b_o
            ],
            out_specs=pl.BlockSpec((nb, S, D), lambda b: (b, 0, 0)),
        ),
        compiler_params=pltpu.CompilerParams(
            dimension_semantics=("parallel",),
            vmem_limit_bytes=vmem_limit),
        cost_estimate=cost,
    )(x, gamma2, beta2, wqkv, bqkv, wo, bo)


# ---------------------------------------------------------------------------
# Kernel 2: LayerNorm + Linear + GELU + Linear + residual (token-tiled)
# ---------------------------------------------------------------------------
def mlp_block_kernel(x_ref, gamma_ref, beta_ref, w1_ref, b1_ref, w2_ref, b2_ref,
                     o_ref, *, eps, approx_gelu):
    x = x_ref[...].astype(jnp.float32)                      # (tm, D)

    # LayerNorm, fp32 statistics.
    mean = jnp.mean(x, axis=-1, keepdims=True)
    var = jnp.mean(x * x, axis=-1, keepdims=True) - mean * mean
    y = (x - mean) * jax.lax.rsqrt(var + eps) * gamma_ref[...] + beta_ref[...]

    cdt = w1_ref.dtype                        # bf16 MXU inputs, fp32 accumulate
    h = jnp.dot(y.astype(cdt), w1_ref[...],
                preferred_element_type=jnp.float32) + b1_ref[...]
    if approx_gelu:
        h = jax.nn.gelu(h, approximate=True)                # EUP tanh (opt-in)
    else:
        h = 0.5 * h * (1.0 + jax.lax.erf(h * 0.7071067811865476))  # nn.GELU()

    # Linear(H -> D) + fused residual.  Dropout is identity at inference.
    out = jnp.dot(h.astype(cdt), w2_ref[...],
                  preferred_element_type=jnp.float32) + b2_ref[...]
    o_ref[...] = (out + x).astype(o_ref.dtype)


def mlp_block(x2, gamma, beta, w1, b1, w2, b2, *, eps=1e-5, tm=256,
              param_dtype=jnp.bfloat16, approx_gelu=False):
    """LayerNorm -> Linear -> GELU -> Linear -> + x over flattened tokens."""
    N, D = x2.shape
    H = w1.shape[1]
    n_cores = _num_tensorcores()

    # Largest token tile that fits; only force extra grid steps when the chip
    # actually has multiple TensorCores (v7x) — on v5e/v6e the grid is serial.
    tm = max(8, min(tm, _round_up(N, 8)))
    if n_cores > 1 and _cdiv(N, tm) < n_cores and N > 8 * n_cores:
        tm = max(8, _round_up(_cdiv(N, n_cores), 8))
    n_pad = _round_up(N, tm)
    # TODO(synk): replace this pad with a masked short last tile to avoid the
    # extra HBM round-trip when N % tm != 0 (unused in the test shapes).
    x_in = jnp.pad(x2, ((0, n_pad - N), (0, 0))) if n_pad != N else x2

    gamma2 = gamma.reshape(1, D).astype(jnp.float32)
    beta2 = beta.reshape(1, D).astype(jnp.float32)
    b1_2 = b1.reshape(1, H).astype(jnp.float32)
    b2_2 = b2.reshape(1, D).astype(jnp.float32)
    w1_c = w1.astype(param_dtype)
    w2_c = w2.astype(param_dtype)

    w_bytes = jnp.dtype(param_dtype).itemsize
    wbuf = 1 if _single_buffer_supported() else 2
    est = (wbuf * 2 * D * H * w_bytes                  # W1 + W2
           + 2 * 2 * tm * D * x2.dtype.itemsize        # x / out tiles, dbl-buffered
           + tm * H * 4 + 3 * tm * D * 4               # fp32 hidden + LN temps
           + (H + 3 * D) * 4)                          # biases / gamma / beta
    cap = _tpu_vmem_capacity_bytes()
    vmem_limit = int(min(0.85 * cap, max(32 * 1024 * 1024, 1.5 * est)))

    cost = pl.CostEstimate(
        flops=4 * N * D * H,                           # two matmuls
        transcendentals=N * H,                         # erf / tanh
        bytes_accessed=2 * N * D * x2.dtype.itemsize + 2 * D * H * w_bytes)

    out = pl.pallas_call(
        functools.partial(mlp_block_kernel, eps=eps, approx_gelu=approx_gelu),
        out_shape=jax.ShapeDtypeStruct((n_pad, D), x2.dtype),
        grid_spec=pltpu.PrefetchScalarGridSpec(
            num_scalar_prefetch=0,
            grid=(n_pad // tm,),
            in_specs=[
                pl.BlockSpec((tm, D), lambda i: (i, 0)),   # x tile
                _const_spec((1, D)),                       # gamma
                _const_spec((1, D)),                       # beta
                _const_spec((D, H)),                       # W1 (bf16)
                _const_spec((1, H)),                       # b1
                _const_spec((H, D)),                       # W2 (bf16)
                _const_spec((1, D)),                       # b2
            ],
            out_specs=pl.BlockSpec((tm, D), lambda i: (i, 0)),
        ),
        compiler_params=pltpu.CompilerParams(
            dimension_semantics=("parallel",),
            vmem_limit_bytes=vmem_limit),
        cost_estimate=cost,
    )(x_in, gamma2, beta2, w1_c, b1_2, w2_c, b2_2)
    # TODO(synk): if MLP weights must stay fp32 at ViT scale (H>=3072) on v7x,
    # add an "arbitrary" H-chunk grid axis streaming W1/W2 into a (tm, D) fp32
    # scratch accumulator; with bf16 + single-buffered weights it fits as-is.

    return out[:N]


# ---------------------------------------------------------------------------
# Full encoder block + pure-JAX reference
# ---------------------------------------------------------------------------
def transformer_encoder_block(x, params, *, num_heads, eps=1e-5, tm=256,
                              param_dtype=jnp.bfloat16):
    # x = MSA(x) + x       (residual fused inside kernel 1)
    x = msa_block(x, params["ln1_gamma"], params["ln1_beta"],
                  params["in_proj_w"], params["in_proj_b"],
                  params["out_proj_w"], params["out_proj_b"],
                  num_heads=num_heads, eps=eps, param_dtype=param_dtype)
    # x = MlpBlock(x) + x  (residual fused inside kernel 2)
    B, S, D = x.shape
    out2 = mlp_block(x.reshape(B * S, D), params["ln2_gamma"], params["ln2_beta"],
                     params["w1"], params["b1"], params["w2"], params["b2"],
                     eps=eps, tm=tm, param_dtype=param_dtype)
    return out2.reshape(B, S, D)


def transformer_encoder_block_reference(x, params, *, num_heads, eps=1e-5):
    def layer_norm(v, g, b):
        vf = v.astype(jnp.float32)
        mu = jnp.mean(vf, axis=-1, keepdims=True)
        var = jnp.mean((vf - mu) ** 2, axis=-1, keepdims=True)
        return (vf - mu) * jax.lax.rsqrt(var + eps) * g + b

    B, S, D = x.shape
    dh = D // num_heads

    # MSA block
    y = layer_norm(x, params["ln1_gamma"], params["ln1_beta"])
    qkv = y @ params["in_proj_w"].T + params["in_proj_b"]
    q, k, v = jnp.split(qkv, 3, axis=-1)
    to_heads = lambda t: t.reshape(B, S, num_heads, dh).transpose(0, 2, 1, 3)
    q, k, v = to_heads(q), to_heads(k), to_heads(v)
    s = jnp.einsum("bhqd,bhkd->bhqk", q, k) / jnp.sqrt(jnp.float32(dh))
    p = jax.nn.softmax(s, axis=-1)
    o = jnp.einsum("bhqk,bhkd->bhqd", p, v).transpose(0, 2, 1, 3).reshape(B, S, D)
    attn = o @ params["out_proj_w"].T + params["out_proj_b"]
    x = attn + x

    # MLP block
    y = layer_norm(x, params["ln2_gamma"], params["ln2_beta"])
    h = y @ params["w1"] + params["b1"]
    h = 0.5 * h * (1.0 + jax.lax.erf(h / jnp.sqrt(jnp.float32(2.0))))
    mlp = h @ params["w2"] + params["b2"]
    return (mlp + x).astype(x.dtype)


if __name__ == "__main__":
    # Small shapes consistent with the module (scaled-down ViT encoder block).
    B, S = 2, 8
    EMBED_DIM = 128     # stands in for 768
    NUM_HEADS = 4       # stands in for 12 (head_dim = 32)
    MLP_SIZE = 512      # stands in for 3072 (4x embed)

    key = jax.random.PRNGKey(0)
    ks = jax.random.split(key, 10)

    x = jax.random.normal(ks[0], (B, S, EMBED_DIM), dtype=jnp.float32)

    params = dict(
        ln1_gamma=jnp.ones((EMBED_DIM,), jnp.float32),
        ln1_beta=jnp.zeros((EMBED_DIM,), jnp.float32),
        in_proj_w=jax.random.normal(ks[1], (3 * EMBED_DIM, EMBED_DIM), jnp.float32) * 0.02,
        in_proj_b=jax.random.normal(ks[2], (3 * EMBED_DIM,), jnp.float32) * 0.02,
        out_proj_w=jax.random.normal(ks[3], (EMBED_DIM, EMBED_DIM), jnp.float32) * 0.02,
        out_proj_b=jax.random.normal(ks[4], (EMBED_DIM,), jnp.float32) * 0.02,
        ln2_gamma=jnp.ones((EMBED_DIM,), jnp.float32),
        ln2_beta=jnp.zeros((EMBED_DIM,), jnp.float32),
        w1=jax.random.normal(ks[5], (EMBED_DIM, MLP_SIZE), jnp.float32) * 0.02,
        b1=jax.random.normal(ks[6], (MLP_SIZE,), jnp.float32) * 0.02,
        w2=jax.random.normal(ks[7], (MLP_SIZE, EMBED_DIM), jnp.float32) * 0.02,
        b2=jax.random.normal(ks[8], (EMBED_DIM,), jnp.float32) * 0.02,
    )

    out = transformer_encoder_block(x, params, num_heads=NUM_HEADS)
    out = jax.block_until_ready(out)

    ref = transformer_encoder_block_reference(x, params, num_heads=NUM_HEADS)
    assert out.shape == (B, S, EMBED_DIM)
    # Tolerance reflects bf16 matmul inputs with fp32 accumulation vs fp32 ref.
    err = float(jnp.max(jnp.abs(out - ref)))
    assert jnp.allclose(out, ref, atol=2e-2, rtol=2e-2), err

    print("KERNEL_OK")
</pallas_src>

<mosaic_0001>
module attributes {stable_mosaic.version = 11 : i64} {
  func.func @_copy(%arg0: i32, %arg1: memref<8x128xf32, #tpu.memory_space<vmem>>, %arg2: memref<8x128xf32, #tpu.memory_space<vmem>>) attributes {dimension_semantics = [#tpu.dimension_semantics<arbitrary>], iteration_bounds = array<i64: 1>, scalar_prefetch = 0 : i64, scratch_operands = 0 : i64, tpu.core_type = #tpu.core_type<tc>, window_params = [{pipeline_mode = #tpu.pipeline_mode<synchronous>, transform_indices = @transform_0, window_bounds = array<i64: 8, 128>}, {pipeline_mode = #tpu.pipeline_mode<synchronous>, transform_indices = @transform_1, window_bounds = array<i64: 8, 128>}]} {
    %c0 = arith.constant 0 : index
    %c0_0 = arith.constant 0 : index
    %0 = vector.load %arg1[%c0, %c0_0] : memref<8x128xf32, #tpu.memory_space<vmem>>, vector<8x128xf32>
    %c0_1 = arith.constant 0 : index
    %c0_2 = arith.constant 0 : index
    %1 = vector.load %arg2[%c0_1, %c0_2] : memref<8x128xf32, #tpu.memory_space<vmem>>, vector<8x128xf32>
    tpu.vector_store %arg2[%c0_1, %c0_2], %0 {strides = array<i32>} : memref<8x128xf32, #tpu.memory_space<vmem>>, vector<8x128xf32>,
    return
  }
  func.func @transform_0(%arg0: i32) -> (i32, i32) {
    %c0_i32 = arith.constant 0 : i32
    %c0_i32_0 = arith.constant 0 : i32
    %c0_i32_1 = arith.constant 0 : i32
    return %c0_i32, %c0_i32_0 : i32, i32
  }
  func.func @transform_1(%arg0: i32) -> (i32, i32) {
    %c0_i32 = arith.constant 0 : i32
    %c0_i32_0 = arith.constant 0 : i32
    %c0_i32_1 = arith.constant 0 : i32
    return %c0_i32, %c0_i32_0 : i32, i32
  }
}

module attributes {stable_mosaic.version = 11 : i64} {
  func.func @attn_block_kernel(%arg0: i32, %arg1: memref<2x8x128xf32, #tpu.memory_space<vmem>>, %arg2: memref<1x128xf32, #tpu.memory_space<vmem>>, %arg3: memref<1x128xf32, #tpu.memory_space<vmem>>, %arg4: memref<128x384xbf16, #tpu.memory_space<vmem>>, %arg5: memref<1x384xf32, #tpu.memory_space<vmem>>, %arg6: memref<128x128xbf16, #tpu.memory_space<vmem>>, %arg7: memref<1x128xf32, #tpu.memory_space<vmem>>, %arg8: memref<2x8x128xf32, #tpu.memory_space<vmem>>) attributes {dimension_semantics = [#tpu.dimension_semantics<parallel>], iteration_bounds = array<i64: 1>, scalar_prefetch = 0 : i64, scratch_operands = 0 : i64, tpu.core_type = #tpu.core_type<tc>, window_params = [{transform_indices = @transform_0, window_bounds = array<i64: 2, 8, 128>}, {pipeline_mode = #tpu.pipeline_mode<synchronous>, transform_indices = @transform_1, window_bounds = array<i64: 1, 128>}, {pipeline_mode = #tpu.pipeline_mode<synchronous>, transform_indices = @transform_2, window_bounds = array<i64: 1, 128>}, {pipeline_mode = #tpu.pipeline_mode<synchronous>, transform_indices = @transform_3, window_bounds = array<i64: 128, 384>}, {pipeline_mode = #tpu.pipeline_mode<synchronous>, transform_indices = @transform_4, window_bounds = array<i64: 1, 384>}, {pipeline_mode = #tpu.pipeline_mode<synchronous>, transform_indices = @transform_5, window_bounds = array<i64: 128, 128>}, {pipeline_mode = #tpu.pipeline_mode<synchronous>, transform_indices = @transform_6, window_bounds = array<i64: 1, 128>}, {transform_indices = @transform_7, window_bounds = array<i64: 2, 8, 128>}]} {
    %c0 = arith.constant 0 : index
    %c0_0 = arith.constant 0 : index
    %c0_1 = arith.constant 0 : index
    %0 = vector.load %arg1[%c0, %c0_0, %c0_1] : memref<2x8x128xf32, #tpu.memory_space<vmem>>, vector<2x8x128xf32>
    %1 = vector.shape_cast %0 : vector<2x8x128xf32> to vector<16x128xf32>
    %cst = arith.constant dense<0.000000e+00> : vector<16xf32>
    %2 = vector.multi_reduction <add>, %1, %cst [1] : vector<16x128xf32> to vector<16xf32>
    %3 = vector.shape_cast %2 : vector<16xf32> to vector<16x1xf32>
    %cst_2 = arith.constant 1.280000e+02 : f32
    %4 = vector.broadcast %cst_2 : f32 to vector<16x1xf32>
    %5 = arith.divf %3, %4 : vector<16x1xf32>
    %6 = arith.mulf %1, %1 : vector<16x128xf32>
    %cst_3 = arith.constant dense<0.000000e+00> : vector<16xf32>
    %7 = vector.multi_reduction <add>, %6, %cst_3 [1] : vector<16x128xf32> to vector<16xf32>
    %8 = vector.shape_cast %7 : vector<16xf32> to vector<16x1xf32>
    %cst_4 = arith.constant 1.280000e+02 : f32
    %9 = vector.broadcast %cst_4 : f32 to vector<16x1xf32>
    %10 = arith.divf %8, %9 : vector<16x1xf32>
    %11 = arith.mulf %5, %5 : vector<16x1xf32>
    %12 = arith.subf %10, %11 : vector<16x1xf32>
    %13 = vector.broadcast %5 : vector<16x1xf32> to vector<16x128xf32>
    %14 = arith.subf %1, %13 : vector<16x128xf32>
    %cst_5 = arith.constant 9.99999974E-6 : f32
    %15 = vector.broadcast %cst_5 : f32 to vector<16x1xf32>
    %16 = arith.addf %12, %15 : vector<16x1xf32>
    %17 = math.rsqrt %16 : vector<16x1xf32>
    %18 = vector.broadcast %17 : vector<16x1xf32> to vector<16x128xf32>
    %19 = arith.mulf %14, %18 : vector<16x128xf32>
    %c0_6 = arith.constant 0 : index
    %c0_7 = arith.constant 0 : index
    %20 = vector.load %arg2[%c0_6, %c0_7] : memref<1x128xf32, #tpu.memory_space<vmem>>, vector<1x128xf32>
    %21 = vector.broadcast %20 : vector<1x128xf32> to vector<16x128xf32>
    %22 = arith.mulf %19, %21 : vector<16x128xf32>
    %c0_8 = arith.constant 0 : index
    %c0_9 = arith.constant 0 : index
    %23 = vector.load %arg3[%c0_8, %c0_9] : memref<1x128xf32, #tpu.memory_space<vmem>>, vector<1x128xf32>
    %24 = vector.broadcast %23 : vector<1x128xf32> to vector<16x128xf32>
    %25 = arith.addf %22, %24 : vector<16x128xf32>
    %26 = arith.truncf %25 : vector<16x128xf32> to vector<16x128xbf16>
    %c0_10 = arith.constant 0 : index
    %c0_11 = arith.constant 0 : index
    %27 = vector.load %arg4[%c0_10, %c0_11] : memref<128x384xbf16, #tpu.memory_space<vmem>>, vector<128x384xbf16>
    %cst_12 = arith.constant dense<0.000000e+00> : vector<16x384xf32>
    %28 = tpu.matmul %26, %27, %cst_12 {dimension_numbers = #tpu.dot_dimension_numbers<[1], [0], [0], [1], [0, 0, 1, 1], [], []>} : vector<16x128xbf16>, vector<128x384xbf16>, vector<16x384xf32> -> vector<16x384xf32>
    %c0_13 = arith.constant 0 : index
    %c0_14 = arith.constant 0 : index
    %29 = vector.load %arg5[%c0_13, %c0_14] : memref<1x384xf32, #tpu.memory_space<vmem>>, vector<1x384xf32>
    %30 = vector.broadcast %29 : vector<1x384xf32> to vector<16x384xf32>
    %31 = arith.addf %28, %30 : vector<16x384xf32>
    %32 = vector.extract_strided_slice %31 {offsets = [0, 0], sizes = [16, 128], strides = [1, 1]} : vector<16x384xf32> to vector<16x128xf32>
    %33 = vector.extract_strided_slice %31 {offsets = [0, 128], sizes = [16, 128], strides = [1, 1]} : vector<16x384xf32> to vector<16x128xf32>
    %34 = vector.extract_strided_slice %31 {offsets = [0, 256], sizes = [16, 128], strides = [1, 1]} : vector<16x384xf32> to vector<16x128xf32>
    %35 = vector.extract_strided_slice %32 {offsets = [0, 0], sizes = [16, 32], strides = [1, 1]} : vector<16x128xf32> to vector<16x32xf32>
    %cst_15 = arith.constant 0.176776692 : f32
    %36 = vector.broadcast %cst_15 : f32 to vector<16x32xf32>
    %37 = arith.mulf %35, %36 : vector<16x32xf32>
    %38 = vector.shape_cast %37 : vector<16x32xf32> to vector<2x8x32xf32>
    %39 = arith.truncf %38 : vector<2x8x32xf32> to vector<2x8x32xbf16>
    %40 = vector.extract_strided_slice %33 {offsets = [0, 0], sizes = [16, 32], strides = [1, 1]} : vector<16x128xf32> to vector<16x32xf32>
    %41 = vector.shape_cast %40 : vector<16x32xf32> to vector<2x8x32xf32>
    %42 = arith.truncf %41 : vector<2x8x32xf32> to vector<2x8x32xbf16>
    %43 = vector.extract_strided_slice %34 {offsets = [0, 0], sizes = [16, 32], strides = [1, 1]} : vector<16x128xf32> to vector<16x32xf32>
    %44 = vector.shape_cast %43 : vector<16x32xf32> to vector<2x8x32xf32>
    %45 = arith.truncf %44 : vector<2x8x32xf32> to vector<2x8x32xbf16>
    "tpu.trace_start"() <{level = 10 : i32, message = "bqd,bkd->bqk"}> : () -> ()
    %cst_16 = arith.constant dense<0.000000e+00> : vector<2x8x8xf32>
    %46 = tpu.matmul %39, %42, %cst_16 {dimension_numbers = #tpu.dot_dimension_numbers<[2], [2], [1], [1], [0, 0, 0, 1, 1, 1], [0], [0]>} : vector<2x8x32xbf16>, vector<2x8x32xbf16>, vector<2x8x8xf32> -> vector<2x8x8xf32>
    "tpu.trace_stop"() : () -> ()
    %cst_17 = arith.constant dense<0xFF800000> : vector<2x8xf32>
    %47 = vector.multi_reduction <maximumf>, %46, %cst_17 [2] : vector<2x8x8xf32> to vector<2x8xf32>
    %48 = vector.shape_cast %47 : vector<2x8xf32> to vector<2x8x1xf32>
    %49 = vector.broadcast %48 : vector<2x8x1xf32> to vector<2x8x8xf32>
    %50 = arith.subf %46, %49 : vector<2x8x8xf32>
    %51 = math.exp %50 : vector<2x8x8xf32>
    %cst_18 = arith.constant dense<0.000000e+00> : vector<2x8xf32>
    %52 = vector.multi_reduction <add>, %51, %cst_18 [2] : vector<2x8x8xf32> to vector<2x8xf32>
    %53 = vector.shape_cast %52 : vector<2x8xf32> to vector<2x8x1xf32>
    %54 = tpu.reciprocal %53 {approx = true} : vector<2x8x1xf32> -> vector<2x8x1xf32>
    %55 = vector.broadcast %54 : vector<2x8x1xf32> to vector<2x8x8xf32>
    %56 = arith.mulf %51, %55 : vector<2x8x8xf32>
    %57 = arith.truncf %56 : vector<2x8x8xf32> to vector<2x8x8xbf16>
    "tpu.trace_start"() <{level = 10 : i32, message = "bqk,bkd->bqd"}> : () -> ()
    %cst_19 = arith.constant dense<0.000000e+00> : vector<2x8x32xf32>
    %58 = tpu.matmul %57, %45, %cst_19 {dimension_numbers = #tpu.dot_dimension_numbers<[2], [1], [1], [2], [0, 0, 0, 1, 1, 2], [0], [0]>} : vector<2x8x8xbf16>, vector<2x8x32xbf16>, vector<2x8x32xf32> -> vector<2x8x32xf32>
    "tpu.trace_stop"() : () -> ()
    %59 = vector.shape_cast %58 : vector<2x8x32xf32> to vector<16x32xf32>
    %60 = vector.extract_strided_slice %32 {offsets = [0, 32], sizes = [16, 32], strides = [1, 1]} : vector<16x128xf32> to vector<16x32xf32>
    %cst_20 = arith.constant 0.176776692 : f32
    %61 = vector.broadcast %cst_20 : f32 to vector<16x32xf32>
    %62 = arith.mulf %60, %61 : vector<16x32xf32>
    %63 = vector.shape_cast %62 : vector<16x32xf32> to vector<2x8x32xf32>
    %64 = arith.truncf %63 : vector<2x8x32xf32> to vector<2x8x32xbf16>
    %65 = vector.extract_strided_slice %33 {offsets = [0, 32], sizes = [16, 32], strides = [1, 1]} : vector<16x128xf32> to vector<16x32xf32>
    %66 = vector.shape_cast %65 : vector<16x32xf32> to vector<2x8x32xf32>
    %67 = arith.truncf %66 : vector<2x8x32xf32> to vector<2x8x32xbf16>
    %68 = vector.extract_strided_slice %34 {offsets = [0, 32], sizes = [16, 32], strides = [1, 1]} : vector<16x128xf32> to vector<16x32xf32>
    %69 = vector.shape_cast %68 : vector<16x32xf32> to vector<2x8x32xf32>
    %70 = arith.truncf %69 : vector<2x8x32xf32> to vector<2x8x32xbf16>
    "tpu.trace_start"() <{level = 10 : i32, message = "bqd,bkd->bqk"}> : () -> ()
    %cst_21 = arith.constant dense<0.000000e+00> : vector<2x8x8xf32>
    %71 = tpu.matmul %64, %67, %cst_21 {dimension_numbers = #tpu.dot_dimension_numbers<[2], [2], [1], [1], [0, 0, 0, 1, 1, 1], [0], [0]>} : vector<2x8x32xbf16>, vector<2x8x32xbf16>, vector<2x8x8xf32> -> vector<2x8x8xf32>
    "tpu.trace_stop"() : () -> ()
    %cst_22 = arith.constant dense<0xFF800000> : vector<2x8xf32>
    %72 = vector.multi_reduction <maximumf>, %71, %cst_22 [2] : vector<2x8x8xf32> to vector<2x8xf32>
    %73 = vector.shape_cast %72 : vector<2x8xf32> to vector<2x8x1xf32>
    %74 = vector.broadcast %73 : vector<2x8x1xf32> to vector<2x8x8xf32>
    %75 = arith.subf %71, %74 : vector<2x8x8xf32>
    %76 = math.exp %75 : vector<2x8x8xf32>
    %cst_23 = arith.constant dense<0.000000e+00> : vector<2x8xf32>
    %77 = vector.multi_reduction <add>, %76, %cst_23 [2] : vector<2x8x8xf32> to vector<2x8xf32>
    %78 = vector.shape_cast %77 : vector<2x8xf32> to vector<2x8x1xf32>
    %79 = tpu.reciprocal %78 {approx = true} : vector<2x8x1xf32> -> vector<2x8x1xf32>
    %80 = vector.broadcast %79 : vector<2x8x1xf32> to vector<2x8x8xf32>
    %81 = arith.mulf %76, %80 : vector<2x8x8xf32>
    %82 = arith.truncf %81 : vector<2x8x8xf32> to vector<2x8x8xbf16>
    "tpu.trace_start"() <{level = 10 : i32, message = "bqk,bkd->bqd"}> : () -> ()
    %cst_24 = arith.constant dense<0.000000e+00> : vector<2x8x32xf32>
    %83 = tpu.matmul %82, %70, %cst_24 {dimension_numbers = #tpu.dot_dimension_numbers<[2], [1], [1], [2], [0, 0, 0, 1, 1, 2], [0], [0]>} : vector<2x8x8xbf16>, vector<2x8x32xbf16>, vector<2x8x32xf32> -> vector<2x8x32xf32>
    "tpu.trace_stop"() : () -> ()
    %84 = vector.shape_cast %83 : vector<2x8x32xf32> to vector<16x32xf32>
    %85 = vector.extract_strided_slice %32 {offsets = [0, 64], sizes = [16, 32], strides = [1, 1]} : vector<16x128xf32> to vector<16x32xf32>
    %cst_25 = arith.constant 0.176776692 : f32
    %86 = vector.broadcast %cst_25 : f32 to vector<16x32xf32>
    %87 = arith.mulf %85, %86 : vector<16x32xf32>
    %88 = vector.shape_cast %87 : vector<16x32xf32> to vector<2x8x32xf32>
    %89 = arith.truncf %88 : vector<2x8x32xf32> to vector<2x8x32xbf16>
    %90 = vector.extract_strided_slice %33 {offsets = [0, 64], sizes = [16, 32], strides = [1, 1]} : vector<16x128xf32> to vector<16x32xf32>
    %91 = vector.shape_cast %90 : vector<16x32xf32> to vector<2x8x32xf32>
    %92 = arith.truncf %91 : vector<2x8x32xf32> to vector<2x8x32xbf16>
    %93 = vector.extract_strided_slice %34 {offsets = [0, 64], sizes = [16, 32], strides = [1, 1]} : vector<16x128xf32> to vector<16x32xf32>
    %94 = vector.shape_cast %93 : vector<16x32xf32> to vector<2x8x32xf32>
    %95 = arith.truncf %94 : vector<2x8x32xf32> to vector<2x8x32xbf16>
    "tpu.trace_start"() <{level = 10 : i32, message = "bqd,bkd->bqk"}> : () -> ()
    %cst_26 = arith.constant dense<0.000000e+00> : vector<2x8x8xf32>
    %96 = tpu.matmul %89, %92, %cst_26 {dimension_numbers = #tpu.dot_dimension_numbers<[2], [2], [1], [1], [0, 0, 0, 1, 1, 1], [0], [0]>} : vector<2x8x32xbf16>, vector<2x8x32xbf16>, vector<2x8x8xf32> -> vector<2x8x8xf32>
    "tpu.trace_stop"() : () -> ()
    %cst_27 = arith.constant dense<0xFF800000> : vector<2x8xf32>
    %97 = vector.multi_reduction <maximumf>, %96, %cst_27 [2] : vector<2x8x8xf32> to vector<2x8xf32>
    %98 = vector.shape_cast %97 : vector<2x8xf32> to vector<2x8x1xf32>
    %99 = vector.broadcast %98 : vector<2x8x1xf32> to vector<2x8x8xf32>
    %100 = arith.subf %96, %99 : vector<2x8x8xf32>
    %101 = math.exp %100 : vector<2x8x8xf32>
    %cst_28 = arith.constant dense<0.000000e+00> : vector<2x8xf32>
    %102 = vector.multi_reduction <add>, %101, %cst_28 [2] : vector<2x8x8xf32> to vector<2x8xf32>
    %103 = vector.shape_cast %102 : vector<2x8xf32> to vector<2x8x1xf32>
    %104 = tpu.reciprocal %103 {approx = true} : vector<2x8x1xf32> -> vector<2x8x1xf32>
    %105 = vector.broadcast %104 : vector<2x8x1xf32> to vector<2x8x8xf32>
    %106 = arith.mulf %101, %105 : vector<2x8x8xf32>
    %107 = arith.truncf %106 : vector<2x8x8xf32> to vector<2x8x8xbf16>
    "tpu.trace_start"() <{level = 10 : i32, message = "bqk,bkd->bqd"}> : () -> ()
    %cst_29 = arith.constant dense<0.000000e+00> : vector<2x8x32xf32>
    %108 = tpu.matmul %107, %95, %cst_29 {dimension_numbers = #tpu.dot_dimension_numbers<[2], [1], [1], [2], [0, 0, 0, 1, 1, 2], [0], [0]>} : vector<2x8x8xbf16>, vector<2x8x32xbf16>, vector<2x8x32xf32> -> vector<2x8x32xf32>
    "tpu.trace_stop"() : () -> ()
    %109 = vector.shape_cast %108 : vector<2x8x32xf32> to vector<16x32xf32>
    %110 = vector.extract_strided_slice %32 {offsets = [0, 96], sizes = [16, 32], strides = [1, 1]} : vector<16x128xf32> to vector<16x32xf32>
    %cst_30 = arith.constant 0.176776692 : f32
    %111 = vector.broadcast %cst_30 : f32 to vector<16x32xf32>
    %112 = arith.mulf %110, %111 : vector<16x32xf32>
    %113 = vector.shape_cast %112 : vector<16x32xf32> to vector<2x8x32xf32>
    %114 = arith.truncf %113 : vector<2x8x32xf32> to vector<2x8x32xbf16>
    %115 = vector.extract_strided_slice %33 {offsets = [0, 96], sizes = [16, 32], strides = [1, 1]} : vector<16x128xf32> to vector<16x32xf32>
    %116 = vector.shape_cast %115 : vector<16x32xf32> to vector<2x8x32xf32>
    %117 = arith.truncf %116 : vector<2x8x32xf32> to vector<2x8x32xbf16>
    %118 = vector.extract_strided_slice %34 {offsets = [0, 96], sizes = [16, 32], strides = [1, 1]} : vector<16x128xf32> to vector<16x32xf32>
    %119 = vector.shape_cast %118 : vector<16x32xf32> to vector<2x8x32xf32>
    %120 = arith.truncf %119 : vector<2x8x32xf32> to vector<2x8x32xbf16>
    "tpu.trace_start"() <{level = 10 : i32, message = "bqd,bkd->bqk"}> : () -> ()
    %cst_31 = arith.constant dense<0.000000e+00> : vector<2x8x8xf32>
    %121 = tpu.matmul %114, %117, %cst_31 {dimension_numbers = #tpu.dot_dimension_numbers<[2], [2], [1], [1], [0, 0, 0, 1, 1, 1], [0], [0]>} : vector<2x8x32xbf16>, vector<2x8x32xbf16>, vector<2x8x8xf32> -> vector<2x8x8xf32>
    "tpu.trace_stop"() : () -> ()
    %cst_32 = arith.constant dense<0xFF800000> : vector<2x8xf32>
    %122 = vector.multi_reduction <maximumf>, %121, %cst_32 [2] : vector<2x8x8xf32> to vector<2x8xf32>
    %123 = vector.shape_cast %122 : vector<2x8xf32> to vector<2x8x1xf32>
    %124 = vector.broadcast %123 : vector<2x8x1xf32> to vector<2x8x8xf32>
    %125 = arith.subf %121, %124 : vector<2x8x8xf32>
    %126 = math.exp %125 : vector<2x8x8xf32>
    %cst_33 = arith.constant dense<0.000000e+00> : vector<2x8xf32>
    %127 = vector.multi_reduction <add>, %126, %cst_33 [2] : vector<2x8x8xf32> to vector<2x8xf32>
    %128 = vector.shape_cast %127 : vector<2x8xf32> to vector<2x8x1xf32>
    %129 = tpu.reciprocal %128 {approx = true} : vector<2x8x1xf32> -> vector<2x8x1xf32>
    %130 = vector.broadcast %129 : vector<2x8x1xf32> to vector<2x8x8xf32>
    %131 = arith.mulf %126, %130 : vector<2x8x8xf32>
    %132 = arith.truncf %131 : vector<2x8x8xf32> to vector<2x8x8xbf16>
    "tpu.trace_start"() <{level = 10 : i32, message = "bqk,bkd->bqd"}> : () -> ()
    %cst_34 = arith.constant dense<0.000000e+00> : vector<2x8x32xf32>
    %133 = tpu.matmul %132, %120, %cst_34 {dimension_numbers = #tpu.dot_dimension_numbers<[2], [1], [1], [2], [0, 0, 0, 1, 1, 2], [0], [0]>} : vector<2x8x8xbf16>, vector<2x8x32xbf16>, vector<2x8x32xf32> -> vector<2x8x32xf32>
    "tpu.trace_stop"() : () -> ()
    %134 = vector.shape_cast %133 : vector<2x8x32xf32> to vector<16x32xf32>
    %135 = tpu.concatenate %59, %84, %109, %134 in 1 : vector<16x32xf32>, vector<16x32xf32>, vector<16x32xf32>, vector<16x32xf32> -> vector<16x128xf32>
    %136 = arith.truncf %135 : vector<16x128xf32> to vector<16x128xbf16>
    %c0_35 = arith.constant 0 : index
    %c0_36 = arith.constant 0 : index
    %137 = vector.load %arg6[%c0_35, %c0_36] : memref<128x128xbf16, #tpu.memory_space<vmem>>, vector<128x128xbf16>
    %cst_37 = arith.constant dense<0.000000e+00> : vector<16x128xf32>
    %138 = tpu.matmul %136, %137, %cst_37 {dimension_numbers = #tpu.dot_dimension_numbers<[1], [0], [0], [1], [0, 0, 1, 1], [], []>} : vector<16x128xbf16>, vector<128x128xbf16>, vector<16x128xf32> -> vector<16x128xf32>
    %c0_38 = arith.constant 0 : index
    %c0_39 = arith.constant 0 : index
    %139 = vector.load %arg7[%c0_38, %c0_39] : memref<1x128xf32, #tpu.memory_space<vmem>>, vector<1x128xf32>
    %140 = vector.broadcast %139 : vector<1x128xf32> to vector<16x128xf32>
    %141 = arith.addf %138, %140 : vector<16x128xf32>
    %142 = arith.addf %141, %1 : vector<16x128xf32>
    %143 = vector.shape_cast %142 : vector<16x128xf32> to vector<2x8x128xf32>
    %c0_40 = arith.constant 0 : index
    %c0_41 = arith.constant 0 : index
    %c0_42 = arith.constant 0 : index
    %144 = vector.load %arg8[%c0_40, %c0_41, %c0_42] : memref<2x8x128xf32, #tpu.memory_space<vmem>>, vector<2x8x128xf32>
    tpu.vector_store %arg8[%c0_40, %c0_41, %c0_42], %143 {strides = array<i32>} : memref<2x8x128xf32, #tpu.memory_space<vmem>>, vector<2x8x128xf32>,
    return
  }
  func.func @transform_0(%arg0: i32) -> (i32, i32, i32) {
    %c0_i32 = arith.constant 0 : i32
    %c0_i32_0 = arith.constant 0 : i32
    %c0_i32_1 = arith.constant 0 : i32
    return %arg0, %c0_i32, %c0_i32_0 : i32, i32, i32
  }
  func.func @transform_1(%arg0: i32) -> (i32, i32) {
    %c0_i32 = arith.constant 0 : i32
    %c0_i32_0 = arith.constant 0 : i32
    %c0_i32_1 = arith.constant 0 : i32
    return %c0_i32, %c0_i32_0 : i32, i32
  }
  func.func @transform_2(%arg0: i32) -> (i32, i32) {
    %c0_i32 = arith.constant 0 : i32
    %c0_i32_0 = arith.constant 0 : i32
    %c0_i32_1 = arith.constant 0 : i32
    return %c0_i32, %c0_i32_0 : i32, i32
  }
  func.func @transform_3(%arg0: i32) -> (i32, i32) {
    %c0_i32 = arith.constant 0 : i32
    %c0_i32_0 = arith.constant 0 : i32
    %c0_i32_1 = arith.constant 0 : i32
    return %c0_i32, %c0_i32_0 : i32, i32
  }
  func.func @transform_4(%arg0: i32) -> (i32, i32) {
    %c0_i32 = arith.constant 0 : i32
    %c0_i32_0 = arith.constant 0 : i32
    %c0_i32_1 = arith.constant 0 : i32
    return %c0_i32, %c0_i32_0 : i32, i32
  }
  func.func @transform_5(%arg0: i32) -> (i32, i32) {
    %c0_i32 = arith.constant 0 : i32
    %c0_i32_0 = arith.constant 0 : i32
    %c0_i32_1 = arith.constant 0 : i32
    return %c0_i32, %c0_i32_0 : i32, i32
  }
  func.func @transform_6(%arg0: i32) -> (i32, i32) {
    %c0_i32 = arith.constant 0 : i32
    %c0_i32_0 = arith.constant 0 : i32
    %c0_i32_1 = arith.constant 0 : i32
    return %c0_i32, %c0_i32_0 : i32, i32
  }
  func.func @transform_7(%arg0: i32) -> (i32, i32, i32) {
    %c0_i32 = arith.constant 0 : i32
    %c0_i32_0 = arith.constant 0 : i32
    %c0_i32_1 = arith.constant 0 : i32
    return %arg0, %c0_i32, %c0_i32_0 : i32, i32, i32
  }
}

</mosaic_0001>

<llo_original>
// kernel: tpu_custom_call.1
$region0: #{tpu_custom_call.1}
  #allocation0 [shape = 'u32[]', space=smem, size = 0x4, offset = 0x4, fixed_abs, tag = 'smem constant byte address 0x4 - core index']
  #allocation1 [shape = 'u32[144,128]{1,0:T(1,128)}', space=vmem, size = 0x12000, scoped, tag = 'internal scratch']
  %s0 = inlined_call_operand.hbm [shape: f32[8,128], index: 0, kind: input, shape index: {}]
  %s1 = inlined_call_operand.hbm [shape: f32[8,128], index: 1, kind: output, shape index: {}]
  %s2 = sld [smem:[#allocation0]]
  $region18: #{tpu_custom_call.1} parent=0
    _
  %s4 = ssub.s32 1, %s2
  %s5 = scalar_select 0, %s4, %s2
  $region1: #{tpu_custom_call.1} parent=0
    #allocation2 [shape = 'u8[4096]{0}', space=vmem, size = 0x1000, scoped, tag = 'input window, operand 0, single buffered']
    #allocation3 [shape = 's32[1]{0}', space=sflag, size = 0x4, scoped, tag = 'scoped memory for tpu_custom_call.1']
    #allocation4 [shape = 's32[1]{0}', space=sflag, size = 0x4, scoped, tag = 'scoped memory for tpu_custom_call.1']
    #allocation5 [shape = 'u8[4096]{0}', space=vmem, size = 0x1000, scoped, tag = 'output window, operand 0, single buffered']
    %6 = vsyncpa [#allocation3], 0
    %7 = vsyncpa [#allocation4], 0
    // Predicated region
    $region2: #{tpu_custom_call.1} parent=1 // pred_check
      _
    $region3: #{tpu_custom_call.1} parent=1 // pred_check_branch
      %9 = sbr.rel (0) target = $region5
    $region4: #{tpu_custom_call.1} parent=1 // pred_region
      %s11 = ssub.s32 128, 128
      %12 = vsyncadd [#allocation3], %s11
      %s14 = sshll.u32 [#allocation2], 4
      %s15 = int_to_ptr.vmem [resolvable:$true] %s14
      %17 = dma.hbm_to_vmem [thread:$0]  %s0, 128, %s15, [#allocation3]
    $region5: #{tpu_custom_call.1} parent=1 // pred_fallthru
      _
    // Predicated region
    $region6: #{tpu_custom_call.1} parent=1 // pred_check
      _
    $region7: #{tpu_custom_call.1} parent=1 // pred_check_branch
      %19 = sbr.rel (0) target = $region9
    $region8: #{tpu_custom_call.1} parent=1 // pred_region
      %20 = dma.done [#allocation3], 128
    $region9: #{tpu_custom_call.1} parent=1 // pred_fallthru
      _
    %v21 = vld [vmem:[#allocation2] sm:$0xff]
    %22 = vst [vmem:[#allocation5] sm:$0xff] %v21
    // Predicated region
    $region10: #{tpu_custom_call.1} parent=1 // pred_check
      _
    $region11: #{tpu_custom_call.1} parent=1 // pred_check_branch
      %24 = sbr.rel (0) target = $region13
    $region12: #{tpu_custom_call.1} parent=1 // pred_region
      %s26 = ssub.s32 128, 128
      %27 = vsyncadd [#allocation4], %s26
      %s29 = sshll.u32 [#allocation5], 4
      %s30 = int_to_ptr.vmem [resolvable:$true] %s29
      %32 = dma.vmem_to_hbm [thread:$0]  %s30, 128, %s1, [#allocation4]
    $region13: #{tpu_custom_call.1} parent=1 // pred_fallthru
      _
    // Predicated region
    $region14: #{tpu_custom_call.1} parent=1 // pred_check
      _
    $region15: #{tpu_custom_call.1} parent=1 // pred_check_branch
      %34 = sbr.rel (0) target = $region17
    $region16: #{tpu_custom_call.1} parent=1 // pred_region
      %35 = dma.done [#allocation4], 128
    $region17: #{tpu_custom_call.1} parent=1 // pred_fallthru
      _
    %36 = vsyncpa [#allocation3], 1
    %37 = vsyncpa [#allocation4], 1

// kernel: tpu_custom_call.1
$region0: #{tpu_custom_call.1}
  #allocation0 [shape = 'u32[]', space=smem, size = 0x4, offset = 0x4, fixed_abs, tag = 'smem constant byte address 0x4 - core index']
  #allocation1 [shape = 'u32[144,128]{1,0:T(1,128)}', space=vmem, size = 0x12000, scoped, tag = 'internal scratch']
  %s0 = inlined_call_operand.hbm [shape: f32[2,8,128], index: 0, kind: input, shape index: {}]
  %s1 = inlined_call_operand.vmem [shape: f32[1,128], index: 1, kind: input, shape index: {}]
  %s2 = inlined_call_operand.vmem [shape: f32[1,128], index: 2, kind: input, shape index: {}]
  %s3 = inlined_call_operand.hbm [shape: bf16[128,384], index: 3, kind: input, shape index: {}]
  %s4 = inlined_call_operand.vmem [shape: f32[1,384], index: 4, kind: input, shape index: {}]
  %s5 = inlined_call_operand.hbm [shape: bf16[128,128], index: 5, kind: input, shape index: {}]
  %s6 = inlined_call_operand.vmem [shape: f32[1,128], index: 6, kind: input, shape index: {}]
  %s7 = inlined_call_operand.hbm [shape: f32[2,8,128], index: 7, kind: output, shape index: {}]
  %s8 = sld [smem:[#allocation0]]
  $region50: #{tpu_custom_call.1} parent=0
    _
  %s10 = ssub.s32 1, %s8
  %s11 = scalar_select 0, %s10, %s8
  $region1: #{tpu_custom_call.1} parent=0
    #allocation2 [shape = 'u8[8192]{0}', space=vmem, size = 0x2000, scoped, tag = 'input window, operand 0, single buffered']
    #allocation3 [shape = 's32[1]{0}', space=sflag, size = 0x4, scoped, tag = 'scoped memory for tpu_custom_call.1']
    #allocation4 [shape = 's32[1]{0}', space=sflag, size = 0x4, scoped, tag = 'scoped memory for tpu_custom_call.1']
    #allocation5 [shape = 'u8[98304]{0}', space=vmem, size = 0x18000, scoped, tag = 'input window, operand 3, single buffered']
    #allocation6 [shape = 's32[1]{0}', space=sflag, size = 0x4, scoped, tag = 'scoped memory for tpu_custom_call.1']
    #allocation7 [shape = 'u8[32768]{0}', space=vmem, size = 0x8000, scoped, tag = 'input window, operand 5, single buffered']
    #allocation8 [shape = 'u8[8192]{0}', space=vmem, size = 0x2000, scoped, tag = 'output window, operand 0, single buffered']
    %12 = vsyncpa [#allocation3], 0
    %13 = vsyncpa [#allocation6], 0
    %14 = vsyncpa [#allocation4], 0
    // Predicated region
    $region2: #{tpu_custom_call.1} parent=1 // pred_check
      _
    $region3: #{tpu_custom_call.1} parent=1 // pred_check_branch
      %16 = sbr.rel (0) target = $region5
    $region4: #{tpu_custom_call.1} parent=1 // pred_region
      %s18 = ssub.s32 256, 256
      %19 = vsyncadd [#allocation3], %s18
      %s20 = sshll.u32 [#allocation2], 4
      %s21 = int_to_ptr.vmem [resolvable:$true] %s20
      %26 = dma.hbm_to_vmem [thread:$0]  %s0, 256, %s21, [#allocation3], 128, 128, 8
    $region5: #{tpu_custom_call.1} parent=1 // pred_fallthru
      _
    // Predicated region
    $region6: #{tpu_custom_call.1} parent=1 // pred_check
      _
    $region7: #{tpu_custom_call.1} parent=1 // pred_check_branch
      %28 = sbr.rel (0) target = $region9
    $region8: #{tpu_custom_call.1} parent=1 // pred_region
      _
    $region9: #{tpu_custom_call.1} parent=1 // pred_fallthru
      _
    // Predicated region
    $region10: #{tpu_custom_call.1} parent=1 // pred_check
      _
    $region11: #{tpu_custom_call.1} parent=1 // pred_check_branch
      %30 = sbr.rel (0) target = $region13
    $region12: #{tpu_custom_call.1} parent=1 // pred_region
      _
    $region13: #{tpu_custom_call.1} parent=1 // pred_fallthru
      _
    // Predicated region
    $region14: #{tpu_custom_call.1} parent=1 // pred_check
      _
    $region15: #{tpu_custom_call.1} parent=1 // pred_check_branch
      %32 = sbr.rel (0) target = $region17
    $region16: #{tpu_custom_call.1} parent=1 // pred_region
      %s34 = ssub.s32 3072, 3072
      %35 = vsyncadd [#allocation6], %s34
      %s36 = sshll.u32 [#allocation5], 4
      %s37 = int_to_ptr.vmem [resolvable:$true] %s36
      %42 = dma.hbm_to_vmem [thread:$0]  %s3, 3072, %s37, [#allocation6], 192, 192, 12
    $region17: #{tpu_custom_call.1} parent=1 // pred_fallthru
      _
    // Predicated region
    $region18: #{tpu_custom_call.1} parent=1 // pred_check
      _
    $region19: #{tpu_custom_call.1} parent=1 // pred_check_branch
      %44 = sbr.rel (0) target = $region21
    $region20: #{tpu_custom_call.1} parent=1 // pred_region
      _
    $region21: #{tpu_custom_call.1} parent=1 // pred_fallthru
      _
    // Predicated region
    $region22: #{tpu_custom_call.1} parent=1 // pred_check
      _
    $region23: #{tpu_custom_call.1} parent=1 // pred_check_branch
      %46 = sbr.rel (0) target = $region25
    $region24: #{tpu_custom_call.1} parent=1 // pred_region
      %s48 = ssub.s32 1024, 1024
      %49 = vsyncadd [#allocation6], %s48
      %s50 = sshll.u32 [#allocation7], 4
      %s51 = int_to_ptr.vmem [resolvable:$true] %s50
      %56 = dma.hbm_to_vmem [thread:$0]  %s5, 1024, %s51, [#allocation6], 64, 64, 4
    $region25: #{tpu_custom_call.1} parent=1 // pred_fallthru
      _
    // Predicated region
    $region26: #{tpu_custom_call.1} parent=1 // pred_check
      _
    $region27: #{tpu_custom_call.1} parent=1 // pred_check_branch
      %58 = sbr.rel (0) target = $region29
    $region28: #{tpu_custom_call.1} parent=1 // pred_region
      _
    $region29: #{tpu_custom_call.1} parent=1 // pred_fallthru
      _
    // Predicated region
    $region30: #{tpu_custom_call.1} parent=1 // pred_check
      _
    $region31: #{tpu_custom_call.1} parent=1 // pred_check_branch
      %60 = sbr.rel (0) target = $region33
    $region32: #{tpu_custom_call.1} parent=1 // pred_region
      %61 = dma.done [#allocation3], 256
    $region33: #{tpu_custom_call.1} parent=1 // pred_fallthru
      _
    // Predicated region
    $region34: #{tpu_custom_call.1} parent=1 // pred_check
      _
    $region35: #{tpu_custom_call.1} parent=1 // pred_check_branch
      %63 = sbr.rel (0) target = $region37
    $region36: #{tpu_custom_call.1} parent=1 // pred_region
      %64 = dma.done [#allocation6], 3072
    $region37: #{tpu_custom_call.1} parent=1 // pred_fallthru
      _
    // Predicated region
    $region38: #{tpu_custom_call.1} parent=1 // pred_check
      _
    $region39: #{tpu_custom_call.1} parent=1 // pred_check_branch
      %66 = sbr.rel (0) target = $region41
    $region40: #{tpu_custom_call.1} parent=1 // pred_region
      %67 = dma.done [#allocation6], 1024
    $region41: #{tpu_custom_call.1} parent=1 // pred_fallthru
      _
    %v69 = vld [vmem:[#allocation2] sm:$0xff]
    %v70 = vld [vmem:[#allocation2 + $0x8] sm:$0xff]
    %71 = vadd.xlane.f32.xlu0 %v69
    %v72 = vpop.xlane.xlu0 %71
    %73 = vadd.xlane.f32.xlu0 %v70
    %v74 = vpop.xlane.xlu0 %73
    %v75 = vrcp.pop 128.0
    %v76 = vmul.f32 %v72, %v75
    %v77 = vmul.f32 %v74, %v75
    %v78 = vmul.f32 %v69, %v69
    %v79 = vmul.f32 %v70, %v70
    %80 = vadd.xlane.f32.xlu0 %v78
    %v81 = vpop.xlane.xlu0 %80
    %82 = vadd.xlane.f32.xlu0 %v79
    %v83 = vpop.xlane.xlu0 %82
    %v84 = vmul.f32 %v81, %v75
    %v85 = vmul.f32 %v83, %v75
    %v86 = vmul.f32 %v76, %v76
    %v87 = vmul.f32 %v77, %v77
    %v88 = vsub.f32 %v84, %v86
    %v89 = vsub.f32 %v85, %v87
    %v90 = vsub.f32 %v69, %v76
    %v91 = vsub.f32 %v70, %v77
    %v92 = vadd.f32 %v88, 1e-05
    %v93 = vadd.f32 %v89, 1e-05
    %v94 = vrsqrt.pop %v92
    %v95 = vrsqrt.pop %v93
    %v96 = vmul.f32 %v90, %v94
    %v97 = vmul.f32 %v91, %v95
    %v98 = vld [vmem:[%s1] sm:$0x1]
    %v100 = vlaneseq
    %v101 = vshrl.u32 %v100, 7
    %v102 = vsub.s32 0, %v101
    %v103 = vrot.slane %v98, %v102
    %v105 = vmul.f32 %v96, %v103
    %v106 = vmul.f32 %v97, %v103
    %v107 = vld [vmem:[%s2] sm:$0x1]
    %v109 = vlaneseq
    %v110 = vshrl.u32 %v109, 7
    %v111 = vsub.s32 0, %v110
    %v112 = vrot.slane %v107, %v111
    %v114 = vadd.f32 %v105, %v112
    %v115 = vadd.f32 %v106, %v112
    %v116 = vpack.c.bf16 %v115, %v114
    %v117 = vld [vmem:[#allocation5] sm:$0xff]
    %v118 = vld [vmem:[#allocation5 + $0x8] sm:$0xf]
    %v119 = vld [vmem:[#allocation5 + $0xc] sm:$0xff]
    %v120 = vld [vmem:[#allocation5 + $0x14] sm:$0xf]
    %v121 = vld [vmem:[#allocation5 + $0x18] sm:$0xff]
    %v122 = vld [vmem:[#allocation5 + $0x20] sm:$0xf]
    %v123 = vld [vmem:[#allocation5 + $0x24] sm:$0xff]
    %v124 = vld [vmem:[#allocation5 + $0x2c] sm:$0xf]
    %v125 = vld [vmem:[#allocation5 + $0x30] sm:$0xff]
    %v126 = vld [vmem:[#allocation5 + $0x38] sm:$0xf]
    %v127 = vld [vmem:[#allocation5 + $0x3c] sm:$0xff]
    %v128 = vld [vmem:[#allocation5 + $0x44] sm:$0xf]
    %v129 = vld [vmem:[#allocation5 + $0x48] sm:$0xff]
    %v130 = vld [vmem:[#allocation5 + $0x50] sm:$0xf]
    %v131 = vld [vmem:[#allocation5 + $0x54] sm:$0xff]
    %v132 = vld [vmem:[#allocation5 + $0x5c] sm:$0xf]
    %v133 = vld [vmem:[#allocation5 + $0x60] sm:$0xff]
    %v134 = vld [vmem:[#allocation5 + $0x68] sm:$0xf]
    %v135 = vld [vmem:[#allocation5 + $0x6c] sm:$0xff]
    %v136 = vld [vmem:[#allocation5 + $0x74] sm:$0xf]
    %v137 = vld [vmem:[#allocation5 + $0x78] sm:$0xff]
    %v138 = vld [vmem:[#allocation5 + $0x80] sm:$0xf]
    %v139 = vld [vmem:[#allocation5 + $0x84] sm:$0xff]
    %v140 = vld [vmem:[#allocation5 + $0x8c] sm:$0xf]
    %v141 = vld [vmem:[#allocation5 + $0x90] sm:$0xff]
    %v142 = vld [vmem:[#allocation5 + $0x98] sm:$0xf]
    %v143 = vld [vmem:[#allocation5 + $0x9c] sm:$0xff]
    %v144 = vld [vmem:[#allocation5 + $0xa4] sm:$0xf]
    %v145 = vld [vmem:[#allocation5 + $0xa8] sm:$0xff]
    %v146 = vld [vmem:[#allocation5 + $0xb0] sm:$0xf]
    %v147 = vld [vmem:[#allocation5 + $0xb4] sm:$0xff]
    %v148 = vld [vmem:[#allocation5 + $0xbc] sm:$0xf]
    %v149 = vld [vmem:[%s4] sm:$0x7]
    %v151 = vlaneseq
    %v152 = vshrl.u32 %v151, 7
    %v153 = vsub.s32 0, %v152
    %v154 = vrot.slane %v149, %v153
    %v155 = vlaneseq
    %v156 = vshrl.u32 %v155, 7
    %v157 = vsub.s32 1, %v156
    %v158 = vrot.slane %v149, %v157
    %v159 = vlaneseq
    %v160 = vshrl.u32 %v159, 7
    %v161 = vsub.s32 2, %v160
    %v162 = vrot.slane %v149, %v161
    %v198 = vunpack.c.l.b16 %v117
    %v199 = vunpack.c.h.b16 %v117
    %v200 = vunpack.c.l.b16 %v118
    %v201 = vunpack.c.l.b16 %v119
    %v202 = vunpack.c.h.b16 %v119
    %v203 = vunpack.c.l.b16 %v120
    %v204 = vunpack.c.l.b16 %v121
    %v205 = vunpack.c.h.b16 %v121
    %v206 = vunpack.c.l.b16 %v122
    %v207 = vunpack.c.l.b16 %v123
    %v208 = vunpack.c.h.b16 %v123
    %v209 = vunpack.c.l.b16 %v124
    %v210 = vunpack.c.l.b16 %v125
    %v211 = vunpack.c.h.b16 %v125
    %v212 = vunpack.c.l.b16 %v126
    %v213 = vunpack.c.l.b16 %v127
    %v214 = vunpack.c.h.b16 %v127
    %v215 = vunpack.c.l.b16 %v128
    %v216 = vunpack.c.l.b16 %v129
    %v217 = vunpack.c.h.b16 %v129
    %v218 = vunpack.c.l.b16 %v130
    %v219 = vunpack.c.l.b16 %v131
    %v220 = vunpack.c.h.b16 %v131
    %v221 = vunpack.c.l.b16 %v132
    %v222 = vunpack.c.l.b16 %v133
    %v223 = vunpack.c.h.b16 %v133
    %v224 = vunpack.c.l.b16 %v134
    %v225 = vunpack.c.l.b16 %v135
    %v226 = vunpack.c.h.b16 %v135
    %v227 = vunpack.c.l.b16 %v136
    %v228 = vunpack.c.l.b16 %v137
    %v229 = vunpack.c.h.b16 %v137
    %v230 = vunpack.c.l.b16 %v138
    %v231 = vunpack.c.l.b16 %v139
    %v232 = vunpack.c.h.b16 %v139
    %v233 = vunpack.c.l.b16 %v140
    %v234 = vunpack.c.l.b16 %v141
    %v235 = vunpack.c.h.b16 %v141
    %v236 = vunpack.c.l.b16 %v142
    %v237 = vunpack.c.l.b16 %v143
    %v238 = vunpack.c.h.b16 %v143
    %v239 = vunpack.c.l.b16 %v144
    %v240 = vunpack.c.l.b16 %v145
    %v241 = vunpack.c.h.b16 %v145
    %v242 = vunpack.c.l.b16 %v146
    %v243 = vunpack.c.l.b16 %v147
    %v244 = vunpack.c.h.b16 %v147
    %v245 = vunpack.c.l.b16 %v148
    %v246 = vpack.c.b16 %v201, %v198
    %v247 = vpack.c.b16 %v202, %v199
    %v248 = vpack.c.b16 %v203, %v200
    %v249 = vpack.c.b16 %v207, %v204
    %v250 = vpack.c.b16 %v208, %v205
    %v251 = vpack.c.b16 %v209, %v206
    %v252 = vpack.c.b16 %v213, %v210
    %v253 = vpack.c.b16 %v214, %v211
    %v254 = vpack.c.b16 %v215, %v212
    %v255 = vpack.c.b16 %v219, %v216
    %v256 = vpack.c.b16 %v220, %v217
    %v257 = vpack.c.b16 %v221, %v218
    %v258 = vpack.c.b16 %v225, %v222
    %v259 = vpack.c.b16 %v226, %v223
    %v260 = vpack.c.b16 %v227, %v224
    %v261 = vpack.c.b16 %v231, %v228
    %v262 = vpack.c.b16 %v232, %v229
    %v263 = vpack.c.b16 %v233, %v230
    %v264 = vpack.c.b16 %v237, %v234
    %v265 = vpack.c.b16 %v238, %v235
    %v266 = vpack.c.b16 %v239, %v236
    %v267 = vpack.c.b16 %v243, %v240
    %v268 = vpack.c.b16 %v244, %v241
    %v269 = vpack.c.b16 %v245, %v242
    %294 = vmatprep.subr.bf16.mxu0 %v247
    %295 = vmatpush1.bf16.msra.mxu0 %v246
    %296 = vmatprep.subr.bf16.mxu0 %v250
    %297 = vmatpush1.bf16.msra.mxu0 %v249
    %298 = vmatprep.subr.bf16.mxu0 %v253
    %299 = vmatpush1.bf16.msra.mxu0 %v252
    %300 = vmatprep.subr.bf16.mxu0 %v256
    %301 = vmatpush1.bf16.msra.mxu0 %v255
    %302 = vmatprep.subr.bf16.mxu0 %v259
    %303 = vmatpush1.bf16.msra.mxu0 %v258
    %304 = vmatprep.subr.bf16.mxu0 %v262
    %305 = vmatpush1.bf16.msra.mxu0 %v261
    %306 = vmatprep.subr.bf16.mxu0 %v265
    %307 = vmatpush1.bf16.msra.mxu0 %v264
    %308 = vmatprep.subr.bf16.mxu0 %v268
    %309 = vmatpush1.bf16.msra.mxu0 %v267
    %310 = vmatprep.subr.bf16.mxu0 0
    %311 = vmatpush1.bf16.msra.mxu0 0
    %312 = vmatprep.subr.bf16.mxu0 0
    %313 = vmatpush1.bf16.msra.mxu0 0
    %314 = vmatprep.subr.bf16.mxu0 0
    %315 = vmatpush1.bf16.msra.mxu0 0
    %316 = vmatprep.subr.bf16.mxu0 0
    %317 = vmatpush1.bf16.msra.mxu0 0
    %318 = vmatprep.subr.bf16.mxu0 0
    %319 = vmatpush1.bf16.msra.mxu0 0
    %320 = vmatprep.subr.bf16.mxu0 0
    %321 = vmatpush1.bf16.msra.mxu0 0
    %322 = vmatprep.subr.bf16.mxu0 0
    %323 = vmatpush1.bf16.msra.mxu0 0
    %324 = vmatprep.subr.bf16.mxu0 0
    %325 = vmatpush1.bf16.msra.mxu0 0
    %326 = vmatprep.mubr.bf16.mxu0 0
    %327 = vmatmul.mubr.bf16.gmra.mrb[0].mxu0 %v116
    %v328 = vpop.f32.mrb[0].mxu0
    %v329 = vadd.f32 %v154, %v328
    %v330 = vpop.f32.mrb[0].mxu0
    %v331 = vadd.f32 %v158, %v330
    %v332 = vpop.f32.mrb[0].mxu0
    %v333 = vadd.f32 %v154, %v332
    %v334 = vpop.f32.mrb[0].mxu0
    %v335 = vadd.f32 %v158, %v334
    %336 = vdwg.mxu0
    %337 = vmatprep.subr.bf16.mxu0 0
    %338 = vmatpush1.bf16.msra.mxu0 %v248
    %339 = vmatprep.subr.bf16.mxu0 0
    %340 = vmatpush1.bf16.msra.mxu0 %v251
    %341 = vmatprep.subr.bf16.mxu0 0
    %342 = vmatpush1.bf16.msra.mxu0 %v254
    %343 = vmatprep.subr.bf16.mxu0 0
    %344 = vmatpush1.bf16.msra.mxu0 %v257
    %345 = vmatprep.subr.bf16.mxu0 0
    %346 = vmatpush1.bf16.msra.mxu0 %v260
    %347 = vmatprep.subr.bf16.mxu0 0
    %348 = vmatpush1.bf16.msra.mxu0 %v263
    %349 = vmatprep.subr.bf16.mxu0 0
    %350 = vmatpush1.bf16.msra.mxu0 %v266
    %351 = vmatprep.subr.bf16.mxu0 0
    %352 = vmatpush1.bf16.msra.mxu0 %v269
    %353 = vmatprep.subr.bf16.mxu0 0
    %354 = vmatpush1.bf16.msra.mxu0 0
    %355 = vmatprep.subr.bf16.mxu0 0
    %356 = vmatpush1.bf16.msra.mxu0 0
    %357 = vmatprep.subr.bf16.mxu0 0
    %358 = vmatpush1.bf16.msra.mxu0 0
    %359 = vmatprep.subr.bf16.mxu0 0
    %360 = vmatpush1.bf16.msra.mxu0 0
    %361 = vmatprep.subr.bf16.mxu0 0
    %362 = vmatpush1.bf16.msra.mxu0 0
    %363 = vmatprep.subr.bf16.mxu0 0
    %364 = vmatpush1.bf16.msra.mxu0 0
    %365 = vmatprep.subr.bf16.mxu0 0
    %366 = vmatpush1.bf16.msra.mxu0 0
    %367 = vmatprep.subr.bf16.mxu0 0
    %368 = vmatpush1.bf16.msra.mxu0 0
    %369 = vmatprep.mubr.bf16.mxu0 0
    %370 = vmatmul.mubr.bf16.gmra.mrb[0].mxu0 %v116
    %v371 = vpop.f32.mrb[0].mxu0
    %v372 = vadd.f32 %v162, %v371
    %v373 = vpop.f32.mrb[0].mxu0
    %v374 = vpop.f32.mrb[0].mxu0
    %v375 = vadd.f32 %v162, %v374
    %v376 = vpop.f32.mrb[0].mxu0
    %377 = vdwg.mxu0
    %v378 = vmul.f32 %v329, 0.17677669
    %v379 = vmul.f32 %v333, 0.17677669
    %v380 = vpack.c.bf16 %v378, %v378
    %v381 = vpack.c.bf16 %v379, %v379
    %v382 = vpack.c.bf16 %v331, %v331
    %v383 = vpack.c.bf16 %v335, %v335
    %v384 = vpack.c.bf16 %v372, %v372
    %v385 = vpack.c.bf16 %v375, %v375
    %vm386 = vcmask 261120
    %v388 = vsel %vm386, %v380, 0
    %v391 = vsel %vm386, %v382, 0
    %393 = vmatprep.subr.bf16.mxu0 0
    %394 = vmatpush1.bf16.xpose.msra.mxu0 %v391
    %395 = vmatprep.subr.bf16.mxu0 0
    %396 = vmatpush1.bf16.xpose.msra.mxu0 0
    %397 = vmatprep.subr.bf16.mxu0 0
    %398 = vmatpush1.bf16.xpose.msra.mxu0 0
    %399 = vmatprep.subr.bf16.mxu0 0
    %400 = vmatpush1.bf16.xpose.msra.mxu0 0
    %401 = vmatprep.subr.bf16.mxu0 0
    %402 = vmatpush1.bf16.xpose.msra.mxu0 0
    %403 = vmatprep.subr.bf16.mxu0 0
    %404 = vmatpush1.bf16.xpose.msra.mxu0 0
    %405 = vmatprep.subr.bf16.mxu0 0
    %406 = vmatpush1.bf16.xpose.msra.mxu0 0
    %407 = vmatprep.subr.bf16.mxu0 0
    %408 = vmatpush1.bf16.xpose.msra.mxu0 0
    %409 = vmatprep.subr.bf16.mxu0 0
    %410 = vmatpush1.bf16.xpose.msra.mxu0 0
    %411 = vmatprep.subr.bf16.mxu0 0
    %412 = vmatpush1.bf16.xpose.msra.mxu0 0
    %413 = vmatprep.subr.bf16.mxu0 0
    %414 = vmatpush1.bf16.xpose.msra.mxu0 0
    %415 = vmatprep.subr.bf16.mxu0 0
    %416 = vmatpush1.bf16.xpose.msra.mxu0 0
    %417 = vmatprep.subr.bf16.mxu0 0
    %418 = vmatpush1.bf16.xpose.msra.mxu0 0
    %419 = vmatprep.subr.bf16.mxu0 0
    %420 = vmatpush1.bf16.xpose.msra.mxu0 0
    %421 = vmatprep.subr.bf16.mxu0 0
    %422 = vmatpush1.bf16.xpose.msra.mxu0 0
    %423 = vmatprep.subr.bf16.mxu0 0
    %424 = vmatpush1.bf16.xpose.msra.mxu0 0
    %425 = vmatprep.mubr.bf16.mxu0 0
    %426 = vmatmul.mubr.bf16.gmra.mrb[0].mxu0 %v388
    %v427 = vpop.f32.mrb[0].mxu0
    %v428 = vadd.f32 0.0, %v427
    %v429 = vpop.f32.mrb[0].mxu0
    %v430 = vpop.f32.mrb[0].mxu0
    %v431 = vpop.f32.mrb[0].mxu0
    %432 = vdwg.mxu0
    %v434 = vsel %vm386, %v381, 0
    %v437 = vsel %vm386, %v383, 0
    %439 = vmatprep.subr.bf16.mxu0 0
    %440 = vmatpush1.bf16.xpose.msra.mxu0 %v437
    %441 = vmatprep.subr.bf16.mxu0 0
    %442 = vmatpush1.bf16.xpose.msra.mxu0 0
    %443 = vmatprep.subr.bf16.mxu0 0
    %444 = vmatpush1.bf16.xpose.msra.mxu0 0
    %445 = vmatprep.subr.bf16.mxu0 0
    %446 = vmatpush1.bf16.xpose.msra.mxu0 0
    %447 = vmatprep.subr.bf16.mxu0 0
    %448 = vmatpush1.bf16.xpose.msra.mxu0 0
    %449 = vmatprep.subr.bf16.mxu0 0
    %450 = vmatpush1.bf16.xpose.msra.mxu0 0
    %451 = vmatprep.subr.bf16.mxu0 0
    %452 = vmatpush1.bf16.xpose.msra.mxu0 0
    %453 = vmatprep.subr.bf16.mxu0 0
    %454 = vmatpush1.bf16.xpose.msra.mxu0 0
    %455 = vmatprep.subr.bf16.mxu0 0
    %456 = vmatpush1.bf16.xpose.msra.mxu0 0
    %457 = vmatprep.subr.bf16.mxu0 0
    %458 = vmatpush1.bf16.xpose.msra.mxu0 0
    %459 = vmatprep.subr.bf16.mxu0 0
    %460 = vmatpush1.bf16.xpose.msra.mxu0 0
    %461 = vmatprep.subr.bf16.mxu0 0
    %462 = vmatpush1.bf16.xpose.msra.mxu0 0
    %463 = vmatprep.subr.bf16.mxu0 0
    %464 = vmatpush1.bf16.xpose.msra.mxu0 0
    %465 = vmatprep.subr.bf16.mxu0 0
    %466 = vmatpush1.bf16.xpose.msra.mxu0 0
    %467 = vmatprep.subr.bf16.mxu0 0
    %468 = vmatpush1.bf16.xpose.msra.mxu0 0
    %469 = vmatprep.subr.bf16.mxu0 0
    %470 = vmatpush1.bf16.xpose.msra.mxu0 0
    %471 = vmatprep.mubr.bf16.mxu0 0
    %472 = vmatmul.mubr.bf16.gmra.mrb[0].mxu0 %v434
    %v473 = vpop.f32.mrb[0].mxu0
    %v474 = vadd.f32 0.0, %v473
    %v475 = vpop.f32.mrb[0].mxu0
    %v476 = vpop.f32.mrb[0].mxu0
    %v477 = vpop.f32.mrb[0].mxu0
    %478 = vdwg.mxu0
    %vm479 = vcmask 64512
    %v480 = vsel %vm479, %v428, -inf
    %481 = vmax.xlane.f32.xlu0 %v480
    %v482 = vpop.xlane.xlu0 %481
    %v483 = vsel %vm479, %v474, -inf
    %484 = vmax.xlane.f32.xlu0 %v483
    %v485 = vpop.xlane.xlu0 %484
    %v486 = vsub.f32 %v428, %v482
    %v487 = vsub.f32 %v474, %v485
    %v488 = vmul.f32 %v486, 1.442695
    %v489 = vpow.pop %v488
    %v490 = vmul.f32 %v487, 1.442695
    %v491 = vpow.pop %v490
    %v492 = vsel %vm479, %v489, 0.0
    %493 = vadd.xlane.f32.xlu0 %v492
    %v494 = vpop.xlane.xlu0 %493
    %v495 = vsel %vm479, %v491, 0.0
    %496 = vadd.xlane.f32.xlu0 %v495
    %v497 = vpop.xlane.xlu0 %496
    %v498 = vrcp.pop %v494
    %v499 = vrcp.pop %v497
    %v500 = vmul.f32 %v489, %v498
    %v501 = vmul.f32 %v491, %v499
    %v502 = vpack.c.bf16 %v500, %v500
    %v503 = vpack.c.bf16 %v501, %v501
    %v505 = vsel %vm479, %v502, 0
    %vm507 = vcmask 1043456
    %v509 = vsel %vm507, %v384, 0
    %511 = vmatprep.subr.bf16.mxu0 0
    %512 = vmatpush1.bf16.msra.mxu0 %v509
    %513 = vmatprep.subr.bf16.mxu0 0
    %514 = vmatpush1.bf16.msra.mxu0 0
    %515 = vmatprep.subr.bf16.mxu0 0
    %516 = vmatpush1.bf16.msra.mxu0 0
    %517 = vmatprep.subr.bf16.mxu0 0
    %518 = vmatpush1.bf16.msra.mxu0 0
    %519 = vmatprep.subr.bf16.mxu0 0
    %520 = vmatpush1.bf16.msra.mxu0 0
    %521 = vmatprep.subr.bf16.mxu0 0
    %522 = vmatpush1.bf16.msra.mxu0 0
    %523 = vmatprep.subr.bf16.mxu0 0
    %524 = vmatpush1.bf16.msra.mxu0 0
    %525 = vmatprep.subr.bf16.mxu0 0
    %526 = vmatpush1.bf16.msra.mxu0 0
    %527 = vmatprep.subr.bf16.mxu0 0
    %528 = vmatpush1.bf16.msra.mxu0 0
    %529 = vmatprep.subr.bf16.mxu0 0
    %530 = vmatpush1.bf16.msra.mxu0 0
    %531 = vmatprep.subr.bf16.mxu0 0
    %532 = vmatpush1.bf16.msra.mxu0 0
    %533 = vmatprep.subr.bf16.mxu0 0
    %534 = vmatpush1.bf16.msra.mxu0 0
    %535 = vmatprep.subr.bf16.mxu0 0
    %536 = vmatpush1.bf16.msra.mxu0 0
    %537 = vmatprep.subr.bf16.mxu0 0
    %538 = vmatpush1.bf16.msra.mxu0 0
    %539 = vmatprep.subr.bf16.mxu0 0
    %540 = vmatpush1.bf16.msra.mxu0 0
    %541 = vmatprep.subr.bf16.mxu0 0
    %542 = vmatpush1.bf16.msra.mxu0 0
    %543 = vmatprep.mubr.bf16.mxu0 0
    %544 = vmatmul.mubr.bf16.gmra.mrb[0].mxu0 %v505
    %v545 = vpop.f32.mrb[0].mxu0
    %v546 = vadd.f32 0.0, %v545
    %v547 = vpop.f32.mrb[0].mxu0
    %v548 = vpop.f32.mrb[0].mxu0
    %v549 = vpop.f32.mrb[0].mxu0
    %550 = vdwg.mxu0
    %v552 = vsel %vm479, %v503, 0
    %v555 = vsel %vm507, %v385, 0
    %557 = vmatprep.subr.bf16.mxu0 0
    %558 = vmatpush1.bf16.msra.mxu0 %v555
    %559 = vmatprep.subr.bf16.mxu0 0
    %560 = vmatpush1.bf16.msra.mxu0 0
    %561 = vmatprep.subr.bf16.mxu0 0
    %562 = vmatpush1.bf16.msra.mxu0 0
    %563 = vmatprep.subr.bf16.mxu0 0
    %564 = vmatpush1.bf16.msra.mxu0 0
    %565 = vmatprep.subr.bf16.mxu0 0
    %566 = vmatpush1.bf16.msra.mxu0 0
    %567 = vmatprep.subr.bf16.mxu0 0
    %568 = vmatpush1.bf16.msra.mxu0 0
    %569 = vmatprep.subr.bf16.mxu0 0
    %570 = vmatpush1.bf16.msra.mxu0 0
    %571 = vmatprep.subr.bf16.mxu0 0
    %572 = vmatpush1.bf16.msra.mxu0 0
    %573 = vmatprep.subr.bf16.mxu0 0
    %574 = vmatpush1.bf16.msra.mxu0 0
    %575 = vmatprep.subr.bf16.mxu0 0
    %576 = vmatpush1.bf16.msra.mxu0 0
    %577 = vmatprep.subr.bf16.mxu0 0
    %578 = vmatpush1.bf16.msra.mxu0 0
    %579 = vmatprep.subr.bf16.mxu0 0
    %580 = vmatpush1.bf16.msra.mxu0 0
    %581 = vmatprep.subr.bf16.mxu0 0
    %582 = vmatpush1.bf16.msra.mxu0 0
    %583 = vmatprep.subr.bf16.mxu0 0
    %584 = vmatpush1.bf16.msra.mxu0 0
    %585 = vmatprep.subr.bf16.mxu0 0
    %586 = vmatpush1.bf16.msra.mxu0 0
    %587 = vmatprep.subr.bf16.mxu0 0
    %588 = vmatpush1.bf16.msra.mxu0 0
    %589 = vmatprep.mubr.bf16.mxu0 0
    %590 = vmatmul.mubr.bf16.gmra.mrb[0].mxu0 %v552
    %v591 = vpop.f32.mrb[0].mxu0
    %v592 = vadd.f32 0.0, %v591
    %v593 = vpop.f32.mrb[0].mxu0
    %v594 = vpop.f32.mrb[0].mxu0
    %v595 = vpop.f32.mrb[0].mxu0
    %596 = vdwg.mxu0
    %598 = vrot.lane.b32.xlu0 %v380, 96
    %v599 = vpop.permute.xlu0 %598
    %601 = vrot.lane.b32.xlu0 %v382, 96
    %v602 = vpop.permute.xlu0 %601
    %v604 = vsel %vm386, %v599, 0
    %v607 = vsel %vm386, %v602, 0
    %609 = vmatprep.subr.bf16.mxu0 0
    %610 = vmatpush1.bf16.xpose.msra.mxu0 %v607
    %611 = vmatprep.subr.bf16.mxu0 0
    %612 = vmatpush1.bf16.xpose.msra.mxu0 0
    %613 = vmatprep.subr.bf16.mxu0 0
    %614 = vmatpush1.bf16.xpose.msra.mxu0 0
    %615 = vmatprep.subr.bf16.mxu0 0
    %616 = vmatpush1.bf16.xpose.msra.mxu0 0
    %617 = vmatprep.subr.bf16.mxu0 0
    %618 = vmatpush1.bf16.xpose.msra.mxu0 0
    %619 = vmatprep.subr.bf16.mxu0 0
    %620 = vmatpush1.bf16.xpose.msra.mxu0 0
    %621 = vmatprep.subr.bf16.mxu0 0
    %622 = vmatpush1.bf16.xpose.msra.mxu0 0
    %623 = vmatprep.subr.bf16.mxu0 0
    %624 = vmatpush1.bf16.xpose.msra.mxu0 0
    %625 = vmatprep.subr.bf16.mxu0 0
    %626 = vmatpush1.bf16.xpose.msra.mxu0 0
    %627 = vmatprep.subr.bf16.mxu0 0
    %628 = vmatpush1.bf16.xpose.msra.mxu0 0
    %629 = vmatprep.subr.bf16.mxu0 0
    %630 = vmatpush1.bf16.xpose.msra.mxu0 0
    %631 = vmatprep.subr.bf16.mxu0 0
    %632 = vmatpush1.bf16.xpose.msra.mxu0 0
    %633 = vmatprep.subr.bf16.mxu0 0
    %634 = vmatpush1.bf16.xpose.msra.mxu0 0
    %635 = vmatprep.subr.bf16.mxu0 0
    %636 = vmatpush1.bf16.xpose.msra.mxu0 0
    %637 = vmatprep.subr.bf16.mxu0 0
    %638 = vmatpush1.bf16.xpose.msra.mxu0 0
    %639 = vmatprep.subr.bf16.mxu0 0
    %640 = vmatpush1.bf16.xpose.msra.mxu0 0
    %641 = vmatprep.mubr.bf16.mxu0 0
    %642 = vmatmul.mubr.bf16.gmra.mrb[0].mxu0 %v604
    %v643 = vpop.f32.mrb[0].mxu0
    %v644 = vadd.f32 0.0, %v643
    %v645 = vpop.f32.mrb[0].mxu0
    %v646 = vpop.f32.mrb[0].mxu0
    %v647 = vpop.f32.mrb[0].mxu0
    %648 = vdwg.mxu0
    %650 = vrot.lane.b32.xlu0 %v381, 96
    %v651 = vpop.permute.xlu0 %650
    %653 = vrot.lane.b32.xlu0 %v383, 96
    %v654 = vpop.permute.xlu0 %653
    %v656 = vsel %vm386, %v651, 0
    %v659 = vsel %vm386, %v654, 0
    %661 = vmatprep.subr.bf16.mxu0 0
    %662 = vmatpush1.bf16.xpose.msra.mxu0 %v659
    %663 = vmatprep.subr.bf16.mxu0 0
    %664 = vmatpush1.bf16.xpose.msra.mxu0 0
    %665 = vmatprep.subr.bf16.mxu0 0
    %666 = vmatpush1.bf16.xpose.msra.mxu0 0
    %667 = vmatprep.subr.bf16.mxu0 0
    %668 = vmatpush1.bf16.xpose.msra.mxu0 0
    %669 = vmatprep.subr.bf16.mxu0 0
    %670 = vmatpush1.bf16.xpose.msra.mxu0 0
    %671 = vmatprep.subr.bf16.mxu0 0
    %672 = vmatpush1.bf16.xpose.msra.mxu0 0
    %673 = vmatprep.subr.bf16.mxu0 0
    %674 = vmatpush1.bf16.xpose.msra.mxu0 0
    %675 = vmatprep.subr.bf16.mxu0 0
    %676 = vmatpush1.bf16.xpose.msra.mxu0 0
    %677 = vmatprep.subr.bf16.mxu0 0
    %678 = vmatpush1.bf16.xpose.msra.mxu0 0
    %679 = vmatprep.subr.bf16.mxu0 0
    %680 = vmatpush1.bf16.xpose.msra.mxu0 0
    %681 = vmatprep.subr.bf16.mxu0 0
    %682 = vmatpush1.bf16.xpose.msra.mxu0 0
    %683 = vmatprep.subr.bf16.mxu0 0
    %684 = vmatpush1.bf16.xpose.msra.mxu0 0
    %685 = vmatprep.subr.bf16.mxu0 0
    %686 = vmatpush1.bf16.xpose.msra.mxu0 0
    %687 = vmatprep.subr.bf16.mxu0 0
    %688 = vmatpush1.bf16.xpose.msra.mxu0 0
    %689 = vmatprep.subr.bf16.mxu0 0
    %690 = vmatpush1.bf16.xpose.msra.mxu0 0
    %691 = vmatprep.subr.bf16.mxu0 0
    %692 = vmatpush1.bf16.xpose.msra.mxu0 0
    %693 = vmatprep.mubr.bf16.mxu0 0
    %694 = vmatmul.mubr.bf16.gmra.mrb[0].mxu0 %v656
    %v695 = vpop.f32.mrb[0].mxu0
    %v696 = vadd.f32 0.0, %v695
    %v697 = vpop.f32.mrb[0].mxu0
    %v698 = vpop.f32.mrb[0].mxu0
    %v699 = vpop.f32.mrb[0].mxu0
    %700 = vdwg.mxu0
    %v701 = vsel %vm479, %v644, -inf
    %702 = vmax.xlane.f32.xlu0 %v701
    %v703 = vpop.xlane.xlu0 %702
    %v704 = vsel %vm479, %v696, -inf
    %705 = vmax.xlane.f32.xlu0 %v704
    %v706 = vpop.xlane.xlu0 %705
    %v707 = vsub.f32 %v644, %v703
    %v708 = vsub.f32 %v696, %v706
    %v709 = vmul.f32 %v707, 1.442695
    %v710 = vpow.pop %v709
    %v711 = vmul.f32 %v708, 1.442695
    %v712 = vpow.pop %v711
    %v713 = vsel %vm479, %v710, 0.0
    %714 = vadd.xlane.f32.xlu0 %v713
    %v715 = vpop.xlane.xlu0 %714
    %v716 = vsel %vm479, %v712, 0.0
    %717 = vadd.xlane.f32.xlu0 %v716
    %v718 = vpop.xlane.xlu0 %717
    %v719 = vrcp.pop %v715
    %v720 = vrcp.pop %v718
    %v721 = vmul.f32 %v710, %v719
    %v722 = vmul.f32 %v712, %v720
    %v723 = vpack.c.bf16 %v721, %v721
    %v724 = vpack.c.bf16 %v722, %v722
    %726 = vrot.lane.b32.xlu0 %v384, 96
    %v727 = vpop.permute.xlu0 %726
    %v729 = vsel %vm479, %v723, 0
    %v732 = vsel %vm507, %v727, 0
    %734 = vmatprep.subr.bf16.mxu0 0
    %735 = vmatpush1.bf16.msra.mxu0 %v732
    %736 = vmatprep.subr.bf16.mxu0 0
    %737 = vmatpush1.bf16.msra.mxu0 0
    %738 = vmatprep.subr.bf16.mxu0 0
    %739 = vmatpush1.bf16.msra.mxu0 0
    %740 = vmatprep.subr.bf16.mxu0 0
    %741 = vmatpush1.bf16.msra.mxu0 0
    %742 = vmatprep.subr.bf16.mxu0 0
    %743 = vmatpush1.bf16.msra.mxu0 0
    %744 = vmatprep.subr.bf16.mxu0 0
    %745 = vmatpush1.bf16.msra.mxu0 0
    %746 = vmatprep.subr.bf16.mxu0 0
    %747 = vmatpush1.bf16.msra.mxu0 0
    %748 = vmatprep.subr.bf16.mxu0 0
    %749 = vmatpush1.bf16.msra.mxu0 0
    %750 = vmatprep.subr.bf16.mxu0 0
    %751 = vmatpush1.bf16.msra.mxu0 0
    %752 = vmatprep.subr.bf16.mxu0 0
    %753 = vmatpush1.bf16.msra.mxu0 0
    %754 = vmatprep.subr.bf16.mxu0 0
    %755 = vmatpush1.bf16.msra.mxu0 0
    %756 = vmatprep.subr.bf16.mxu0 0
    %757 = vmatpush1.bf16.msra.mxu0 0
    %758 = vmatprep.subr.bf16.mxu0 0
    %759 = vmatpush1.bf16.msra.mxu0 0
    %760 = vmatprep.subr.bf16.mxu0 0
    %761 = vmatpush1.bf16.msra.mxu0 0
    %762 = vmatprep.subr.bf16.mxu0 0
    %763 = vmatpush1.bf16.msra.mxu0 0
    %764 = vmatprep.subr.bf16.mxu0 0
    %765 = vmatpush1.bf16.msra.mxu0 0
    %766 = vmatprep.mubr.bf16.mxu0 0
    %767 = vmatmul.mubr.bf16.gmra.mrb[0].mxu0 %v729
    %v768 = vpop.f32.mrb[0].mxu0
    %v769 = vadd.f32 0.0, %v768
    %v770 = vpop.f32.mrb[0].mxu0
    %v771 = vpop.f32.mrb[0].mxu0
    %v772 = vpop.f32.mrb[0].mxu0
    %773 = vdwg.mxu0
    %775 = vrot.lane.b32.xlu0 %v385, 96
    %v776 = vpop.permute.xlu0 %775
    %v778 = vsel %vm479, %v724, 0
    %v781 = vsel %vm507, %v776, 0
    %783 = vmatprep.subr.bf16.mxu0 0
    %784 = vmatpush1.bf16.msra.mxu0 %v781
    %785 = vmatprep.subr.bf16.mxu0 0
    %786 = vmatpush1.bf16.msra.mxu0 0
    %787 = vmatprep.subr.bf16.mxu0 0
    %788 = vmatpush1.bf16.msra.mxu0 0
    %789 = vmatprep.subr.bf16.mxu0 0
    %790 = vmatpush1.bf16.msra.mxu0 0
    %791 = vmatprep.subr.bf16.mxu0 0
    %792 = vmatpush1.bf16.msra.mxu0 0
    %793 = vmatprep.subr.bf16.mxu0 0
    %794 = vmatpush1.bf16.msra.mxu0 0
    %795 = vmatprep.subr.bf16.mxu0 0
    %796 = vmatpush1.bf16.msra.mxu0 0
    %797 = vmatprep.subr.bf16.mxu0 0
    %798 = vmatpush1.bf16.msra.mxu0 0
    %799 = vmatprep.subr.bf16.mxu0 0
    %800 = vmatpush1.bf16.msra.mxu0 0
    %801 = vmatprep.subr.bf16.mxu0 0
    %802 = vmatpush1.bf16.msra.mxu0 0
    %803 = vmatprep.subr.bf16.mxu0 0
    %804 = vmatpush1.bf16.msra.mxu0 0
    %805 = vmatprep.subr.bf16.mxu0 0
    %806 = vmatpush1.bf16.msra.mxu0 0
    %807 = vmatprep.subr.bf16.mxu0 0
    %808 = vmatpush1.bf16.msra.mxu0 0
    %809 = vmatprep.subr.bf16.mxu0 0
    %810 = vmatpush1.bf16.msra.mxu0 0
    %811 = vmatprep.subr.bf16.mxu0 0
    %812 = vmatpush1.bf16.msra.mxu0 0
    %813 = vmatprep.subr.bf16.mxu0 0
    %814 = vmatpush1.bf16.msra.mxu0 0
    %815 = vmatprep.mubr.bf16.mxu0 0
    %816 = vmatmul.mubr.bf16.gmra.mrb[0].mxu0 %v778
    %v817 = vpop.f32.mrb[0].mxu0
    %v818 = vadd.f32 0.0, %v817
    %v819 = vpop.f32.mrb[0].mxu0
    %v820 = vpop.f32.mrb[0].mxu0
    %v821 = vpop.f32.mrb[0].mxu0
    %822 = vdwg.mxu0
    %823 = vrot.lane.b32.xlu0 %v380, 64
    %v824 = vpop.permute.xlu0 %823
    %825 = vrot.lane.b32.xlu0 %v382, 64
    %v826 = vpop.permute.xlu0 %825
    %v828 = vsel %vm386, %v824, 0
    %v831 = vsel %vm386, %v826, 0
    %833 = vmatprep.subr.bf16.mxu0 0
    %834 = vmatpush1.bf16.xpose.msra.mxu0 %v831
    %835 = vmatprep.subr.bf16.mxu0 0
    %836 = vmatpush1.bf16.xpose.msra.mxu0 0
    %837 = vmatprep.subr.bf16.mxu0 0
    %838 = vmatpush1.bf16.xpose.msra.mxu0 0
    %839 = vmatprep.subr.bf16.mxu0 0
    %840 = vmatpush1.bf16.xpose.msra.mxu0 0
    %841 = vmatprep.subr.bf16.mxu0 0
    %842 = vmatpush1.bf16.xpose.msra.mxu0 0
    %843 = vmatprep.subr.bf16.mxu0 0
    %844 = vmatpush1.bf16.xpose.msra.mxu0 0
    %845 = vmatprep.subr.bf16.mxu0 0
    %846 = vmatpush1.bf16.xpose.msra.mxu0 0
    %847 = vmatprep.subr.bf16.mxu0 0
    %848 = vmatpush1.bf16.xpose.msra.mxu0 0
    %849 = vmatprep.subr.bf16.mxu0 0
    %850 = vmatpush1.bf16.xpose.msra.mxu0 0
    %851 = vmatprep.subr.bf16.mxu0 0
    %852 = vmatpush1.bf16.xpose.msra.mxu0 0
    %853 = vmatprep.subr.bf16.mxu0 0
    %854 = vmatpush1.bf16.xpose.msra.mxu0 0
    %855 = vmatprep.subr.bf16.mxu0 0
    %856 = vmatpush1.bf16.xpose.msra.mxu0 0
    %857 = vmatprep.subr.bf16.mxu0 0
    %858 = vmatpush1.bf16.xpose.msra.mxu0 0
    %859 = vmatprep.subr.bf16.mxu0 0
    %860 = vmatpush1.bf16.xpose.msra.mxu0 0
    %861 = vmatprep.subr.bf16.mxu0 0
    %862 = vmatpush1.bf16.xpose.msra.mxu0 0
    %863 = vmatprep.subr.bf16.mxu0 0
    %864 = vmatpush1.bf16.xpose.msra.mxu0 0
    %865 = vmatprep.mubr.bf16.mxu0 0
    %866 = vmatmul.mubr.bf16.gmra.mrb[0].mxu0 %v828
    %v867 = vpop.f32.mrb[0].mxu0
    %v868 = vadd.f32 0.0, %v867
    %v869 = vpop.f32.mrb[0].mxu0
    %v870 = vpop.f32.mrb[0].mxu0
    %v871 = vpop.f32.mrb[0].mxu0
    %872 = vdwg.mxu0
    %873 = vrot.lane.b32.xlu0 %v381, 64
    %v874 = vpop.permute.xlu0 %873
    %875 = vrot.lane.b32.xlu0 %v383, 64
    %v876 = vpop.permute.xlu0 %875
    %v878 = vsel %vm386, %v874, 0
    %v881 = vsel %vm386, %v876, 0
    %883 = vmatprep.subr.bf16.mxu0 0
    %884 = vmatpush1.bf16.xpose.msra.mxu0 %v881
    %885 = vmatprep.subr.bf16.mxu0 0
    %886 = vmatpush1.bf16.xpose.msra.mxu0 0
    %887 = vmatprep.subr.bf16.mxu0 0
    %888 = vmatpush1.bf16.xpose.msra.mxu0 0
    %889 = vmatprep.subr.bf16.mxu0 0
    %890 = vmatpush1.bf16.xpose.msra.mxu0 0
    %891 = vmatprep.subr.bf16.mxu0 0
    %892 = vmatpush1.bf16.xpose.msra.mxu0 0
    %893 = vmatprep.subr.bf16.mxu0 0
    %894 = vmatpush1.bf16.xpose.msra.mxu0 0
    %895 = vmatprep.subr.bf16.mxu0 0
    %896 = vmatpush1.bf16.xpose.msra.mxu0 0
    %897 = vmatprep.subr.bf16.mxu0 0
    %898 = vmatpush1.bf16.xpose.msra.mxu0 0
    %899 = vmatprep.subr.bf16.mxu0 0
    %900 = vmatpush1.bf16.xpose.msra.mxu0 0
    %901 = vmatprep.subr.bf16.mxu0 0
    %902 = vmatpush1.bf16.xpose.msra.mxu0 0
    %903 = vmatprep.subr.bf16.mxu0 0
    %904 = vmatpush1.bf16.xpose.msra.mxu0 0
    %905 = vmatprep.subr.bf16.mxu0 0
    %906 = vmatpush1.bf16.xpose.msra.mxu0 0
    %907 = vmatprep.subr.bf16.mxu0 0
    %908 = vmatpush1.bf16.xpose.msra.mxu0 0
    %909 = vmatprep.subr.bf16.mxu0 0
    %910 = vmatpush1.bf16.xpose.msra.mxu0 0
    %911 = vmatprep.subr.bf16.mxu0 0
    %912 = vmatpush1.bf16.xpose.msra.mxu0 0
    %913 = vmatprep.subr.bf16.mxu0 0
    %914 = vmatpush1.bf16.xpose.msra.mxu0 0
    %915 = vmatprep.mubr.bf16.mxu0 0
    %916 = vmatmul.mubr.bf16.gmra.mrb[0].mxu0 %v878
    %v917 = vpop.f32.mrb[0].mxu0
    %v918 = vadd.f32 0.0, %v917
    %v919 = vpop.f32.mrb[0].mxu0
    %v920 = vpop.f32.mrb[0].mxu0
    %v921 = vpop.f32.mrb[0].mxu0
    %922 = vdwg.mxu0
    %v923 = vsel %vm479, %v868, -inf
    %924 = vmax.xlane.f32.xlu0 %v923
    %v925 = vpop.xlane.xlu0 %924
    %v926 = vsel %vm479, %v918, -inf
    %927 = vmax.xlane.f32.xlu0 %v926
    %v928 = vpop.xlane.xlu0 %927
    %v929 = vsub.f32 %v868, %v925
    %v930 = vsub.f32 %v918, %v928
    %v931 = vmul.f32 %v929, 1.442695
    %v932 = vpow.pop %v931
    %v933 = vmul.f32 %v930, 1.442695
    %v934 = vpow.pop %v933
    %v935 = vsel %vm479, %v932, 0.0
    %936 = vadd.xlane.f32.xlu0 %v935
    %v937 = vpop.xlane.xlu0 %936
    %v938 = vsel %vm479, %v934, 0.0
    %939 = vadd.xlane.f32.xlu0 %v938
    %v940 = vpop.xlane.xlu0 %939
    %v941 = vrcp.pop %v937
    %v942 = vrcp.pop %v940
    %v943 = vmul.f32 %v932, %v941
    %v944 = vmul.f32 %v934, %v942
    %v945 = vpack.c.bf16 %v943, %v943
    %v946 = vpack.c.bf16 %v944, %v944
    %947 = vrot.lane.b32.xlu0 %v384, 64
    %v948 = vpop.permute.xlu0 %947
    %v950 = vsel %vm479, %v945, 0
    %v953 = vsel %vm507, %v948, 0
    %955 = vmatprep.subr.bf16.mxu0 0
    %956 = vmatpush1.bf16.msra.mxu0 %v953
    %957 = vmatprep.subr.bf16.mxu0 0
    %958 = vmatpush1.bf16.msra.mxu0 0
    %959 = vmatprep.subr.bf16.mxu0 0
    %960 = vmatpush1.bf16.msra.mxu0 0
    %961 = vmatprep.subr.bf16.mxu0 0
    %962 = vmatpush1.bf16.msra.mxu0 0
    %963 = vmatprep.subr.bf16.mxu0 0
    %964 = vmatpush1.bf16.msra.mxu0 0
    %965 = vmatprep.subr.bf16.mxu0 0
    %966 = vmatpush1.bf16.msra.mxu0 0
    %967 = vmatprep.subr.bf16.mxu0 0
    %968 = vmatpush1.bf16.msra.mxu0 0
    %969 = vmatprep.subr.bf16.mxu0 0
    %970 = vmatpush1.bf16.msra.mxu0 0
    %971 = vmatprep.subr.bf16.mxu0 0
    %972 = vmatpush1.bf16.msra.mxu0 0
    %973 = vmatprep.subr.bf16.mxu0 0
    %974 = vmatpush1.bf16.msra.mxu0 0
    %975 = vmatprep.subr.bf16.mxu0 0
    %976 = vmatpush1.bf16.msra.mxu0 0
    %977 = vmatprep.subr.bf16.mxu0 0
    %978 = vmatpush1.bf16.msra.mxu0 0
    %979 = vmatprep.subr.bf16.mxu0 0
    %980 = vmatpush1.bf16.msra.mxu0 0
    %981 = vmatprep.subr.bf16.mxu0 0
    %982 = vmatpush1.bf16.msra.mxu0 0
    %983 = vmatprep.subr.bf16.mxu0 0
    %984 = vmatpush1.bf16.msra.mxu0 0
    %985 = vmatprep.subr.bf16.mxu0 0
    %986 = vmatpush1.bf16.msra.mxu0 0
    %987 = vmatprep.mubr.bf16.mxu0 0
    %988 = vmatmul.mubr.bf16.gmra.mrb[0].mxu0 %v950
    %v989 = vpop.f32.mrb[0].mxu0
    %v990 = vadd.f32 0.0, %v989
    %v991 = vpop.f32.mrb[0].mxu0
    %v992 = vpop.f32.mrb[0].mxu0
    %v993 = vpop.f32.mrb[0].mxu0
    %994 = vdwg.mxu0
    %995 = vrot.lane.b32.xlu0 %v385, 64
    %v996 = vpop.permute.xlu0 %995
    %v998 = vsel %vm479, %v946, 0
    %v1001 = vsel %vm507, %v996, 0
    %1003 = vmatprep.subr.bf16.mxu0 0
    %1004 = vmatpush1.bf16.msra.mxu0 %v1001
    %1005 = vmatprep.subr.bf16.mxu0 0
    %1006 = vmatpush1.bf16.msra.mxu0 0
    %1007 = vmatprep.subr.bf16.mxu0 0
    %1008 = vmatpush1.bf16.msra.mxu0 0
    %1009 = vmatprep.subr.bf16.mxu0 0
    %1010 = vmatpush1.bf16.msra.mxu0 0
    %1011 = vmatprep.subr.bf16.mxu0 0
    %1012 = vmatpush1.bf16.msra.mxu0 0
    %1013 = vmatprep.subr.bf16.mxu0 0
    %1014 = vmatpush1.bf16.msra.mxu0 0
    %1015 = vmatprep.subr.bf16.mxu0 0
    %1016 = vmatpush1.bf16.msra.mxu0 0
    %1017 = vmatprep.subr.bf16.mxu0 0
    %1018 = vmatpush1.bf16.msra.mxu0 0
    %1019 = vmatprep.subr.bf16.mxu0 0
    %1020 = vmatpush1.bf16.msra.mxu0 0
    %1021 = vmatprep.subr.bf16.mxu0 0
    %1022 = vmatpush1.bf16.msra.mxu0 0
    %1023 = vmatprep.subr.bf16.mxu0 0
    %1024 = vmatpush1.bf16.msra.mxu0 0
    %1025 = vmatprep.subr.bf16.mxu0 0
    %1026 = vmatpush1.bf16.msra.mxu0 0
    %1027 = vmatprep.subr.bf16.mxu0 0
    %1028 = vmatpush1.bf16.msra.mxu0 0
    %1029 = vmatprep.subr.bf16.mxu0 0
    %1030 = vmatpush1.bf16.msra.mxu0 0
    %1031 = vmatprep.subr.bf16.mxu0 0
    %1032 = vmatpush1.bf16.msra.mxu0 0
    %1033 = vmatprep.subr.bf16.mxu0 0
    %1034 = vmatpush1.bf16.msra.mxu0 0
    %1035 = vmatprep.mubr.bf16.mxu0 0
    %1036 = vmatmul.mubr.bf16.gmra.mrb[0].mxu0 %v998
    %v1037 = vpop.f32.mrb[0].mxu0
    %v1038 = vadd.f32 0.0, %v1037
    %v1039 = vpop.f32.mrb[0].mxu0
    %v1040 = vpop.f32.mrb[0].mxu0
    %v1041 = vpop.f32.mrb[0].mxu0
    %1042 = vdwg.mxu0
    %1043 = vrot.lane.b32.xlu0 %v380, 32
    %v1044 = vpop.permute.xlu0 %1043
    %1045 = vrot.lane.b32.xlu0 %v382, 32
    %v1046 = vpop.permute.xlu0 %1045
    %v1048 = vsel %vm386, %v1044, 0
    %v1051 = vsel %vm386, %v1046, 0
    %1053 = vmatprep.subr.bf16.mxu0 0
    %1054 = vmatpush1.bf16.xpose.msra.mxu0 %v1051
    %1055 = vmatprep.subr.bf16.mxu0 0
    %1056 = vmatpush1.bf16.xpose.msra.mxu0 0
    %1057 = vmatprep.subr.bf16.mxu0 0
    %1058 = vmatpush1.bf16.xpose.msra.mxu0 0
    %1059 = vmatprep.subr.bf16.mxu0 0
    %1060 = vmatpush1.bf16.xpose.msra.mxu0 0
    %1061 = vmatprep.subr.bf16.mxu0 0
    %1062 = vmatpush1.bf16.xpose.msra.mxu0 0
    %1063 = vmatprep.subr.bf16.mxu0 0
    %1064 = vmatpush1.bf16.xpose.msra.mxu0 0
    %1065 = vmatprep.subr.bf16.mxu0 0
    %1066 = vmatpush1.bf16.xpose.msra.mxu0 0
    %1067 = vmatprep.subr.bf16.mxu0 0
    %1068 = vmatpush1.bf16.xpose.msra.mxu0 0
    %1069 = vmatprep.subr.bf16.mxu0 0
    %1070 = vmatpush1.bf16.xpose.msra.mxu0 0
    %1071 = vmatprep.subr.bf16.mxu0 0
    %1072 = vmatpush1.bf16.xpose.msra.mxu0 0
    %1073 = vmatprep.subr.bf16.mxu0 0
    %1074 = vmatpush1.bf16.xpose.msra.mxu0 0
    %1075 = vmatprep.subr.bf16.mxu0 0
    %1076 = vmatpush1.bf16.xpose.msra.mxu0 0
    %1077 = vmatprep.subr.bf16.mxu0 0
    %1078 = vmatpush1.bf16.xpose.msra.mxu0 0
    %1079 = vmatprep.subr.bf16.mxu0 0
    %1080 = vmatpush1.bf16.xpose.msra.mxu0 0
    %1081 = vmatprep.subr.bf16.mxu0 0
    %1082 = vmatpush1.bf16.xpose.msra.mxu0 0
    %1083 = vmatprep.subr.bf16.mxu0 0
    %1084 = vmatpush1.bf16.xpose.msra.mxu0 0
    %1085 = vmatprep.mubr.bf16.mxu0 0
    %1086 = vmatmul.mubr.bf16.gmra.mrb[0].mxu0 %v1048
    %v1087 = vpop.f32.mrb[0].mxu0
    %v1088 = vadd.f32 0.0, %v1087
    %v1089 = vpop.f32.mrb[0].mxu0
    %v1090 = vpop.f32.mrb[0].mxu0
    %v1091 = vpop.f32.mrb[0].mxu0
    %1092 = vdwg.mxu0
    %1093 = vrot.lane.b32.xlu0 %v381, 32
    %v1094 = vpop.permute.xlu0 %1093
    %1095 = vrot.lane.b32.xlu0 %v383, 32
    %v1096 = vpop.permute.xlu0 %1095
    %v1098 = vsel %vm386, %v1094, 0
    %v1101 = vsel %vm386, %v1096, 0
    %1103 = vmatprep.subr.bf16.mxu0 0
    %1104 = vmatpush1.bf16.xpose.msra.mxu0 %v1101
    %1105 = vmatprep.subr.bf16.mxu0 0
    %1106 = vmatpush1.bf16.xpose.msra.mxu0 0
    %1107 = vmatprep.subr.bf16.mxu0 0
    %1108 = vmatpush1.bf16.xpose.msra.mxu0 0
    %1109 = vmatprep.subr.bf16.mxu0 0
    %1110 = vmatpush1.bf16.xpose.msra.mxu0 0
    %1111 = vmatprep.subr.bf16.mxu0 0
    %1112 = vmatpush1.bf16.xpose.msra.mxu0 0
    %1113 = vmatprep.subr.bf16.mxu0 0
    %1114 = vmatpush1.bf16.xpose.msra.mxu0 0
    %1115 = vmatprep.subr.bf16.mxu0 0
    %1116 = vmatpush1.bf16.xpose.msra.mxu0 0
    %1117 = vmatprep.subr.bf16.mxu0 0
    %1118 = vmatpush1.bf16.xpose.msra.mxu0 0
    %1119 = vmatprep.subr.bf16.mxu0 0
    %1120 = vmatpush1.bf16.xpose.msra.mxu0 0
    %1121 = vmatprep.subr.bf16.mxu0 0
    %1122 = vmatpush1.bf16.xpose.msra.mxu0 0
    %1123 = vmatprep.subr.bf16.mxu0 0
    %1124 = vmatpush1.bf16.xpose.msra.mxu0 0
    %1125 = vmatprep.subr.bf16.mxu0 0
    %1126 = vmatpush1.bf16.xpose.msra.mxu0 0
    %1127 = vmatprep.subr.bf16.mxu0 0
    %1128 = vmatpush1.bf16.xpose.msra.mxu0 0
    %1129 = vmatprep.subr.bf16.mxu0 0
    %1130 = vmatpush1.bf16.xpose.msra.mxu0 0
    %1131 = vmatprep.subr.bf16.mxu0 0
    %1132 = vmatpush1.bf16.xpose.msra.mxu0 0
    %1133 = vmatprep.subr.bf16.mxu0 0
    %1134 = vmatpush1.bf16.xpose.msra.mxu0 0
    %1135 = vmatprep.mubr.bf16.mxu0 0
    %1136 = vmatmul.mubr.bf16.gmra.mrb[0].mxu0 %v1098
    %v1137 = vpop.f32.mrb[0].mxu0
    %v1138 = vadd.f32 0.0, %v1137
    %v1139 = vpop.f32.mrb[0].mxu0
    %v1140 = vpop.f32.mrb[0].mxu0
    %v1141 = vpop.f32.mrb[0].mxu0
    %1142 = vdwg.mxu0
    %v1143 = vsel %vm479, %v1088, -inf
    %1144 = vmax.xlane.f32.xlu0 %v1143
    %v1145 = vpop.xlane.xlu0 %1144
    %v1146 = vsel %vm479, %v1138, -inf
    %1147 = vmax.xlane.f32.xlu0 %v1146
    %v1148 = vpop.xlane.xlu0 %1147
    %v1149 = vsub.f32 %v1088, %v1145
    %v1150 = vsub.f32 %v1138, %v1148
    %v1151 = vmul.f32 %v1149, 1.442695
    %v1152 = vpow.pop %v1151
    %v1153 = vmul.f32 %v1150, 1.442695
    %v1154 = vpow.pop %v1153
    %v1155 = vsel %vm479, %v1152, 0.0
    %1156 = vadd.xlane.f32.xlu0 %v1155
    %v1157 = vpop.xlane.xlu0 %1156
    %v1158 = vsel %vm479, %v1154, 0.0
    %1159 = vadd.xlane.f32.xlu0 %v1158
    %v1160 = vpop.xlane.xlu0 %1159
    %v1161 = vrcp.pop %v1157
    %v1162 = vrcp.pop %v1160
    %v1163 = vmul.f32 %v1152, %v1161
    %v1164 = vmul.f32 %v1154, %v1162
    %v1165 = vpack.c.bf16 %v1163, %v1163
    %v1166 = vpack.c.bf16 %v1164, %v1164
    %1167 = vrot.lane.b32.xlu0 %v384, 32
    %v1168 = vpop.permute.xlu0 %1167
    %v1170 = vsel %vm479, %v1165, 0
    %v1173 = vsel %vm507, %v1168, 0
    %1175 = vmatprep.subr.bf16.mxu0 0
    %1176 = vmatpush1.bf16.msra.mxu0 %v1173
    %1177 = vmatprep.subr.bf16.mxu0 0
    %1178 = vmatpush1.bf16.msra.mxu0 0
    %1179 = vmatprep.subr.bf16.mxu0 0
    %1180 = vmatpush1.bf16.msra.mxu0 0
    %1181 = vmatprep.subr.bf16.mxu0 0
    %1182 = vmatpush1.bf16.msra.mxu0 0
    %1183 = vmatprep.subr.bf16.mxu0 0
    %1184 = vmatpush1.bf16.msra.mxu0 0
    %1185 = vmatprep.subr.bf16.mxu0 0
    %1186 = vmatpush1.bf16.msra.mxu0 0
    %1187 = vmatprep.subr.bf16.mxu0 0
    %1188 = vmatpush1.bf16.msra.mxu0 0
    %1189 = vmatprep.subr.bf16.mxu0 0
    %1190 = vmatpush1.bf16.msra.mxu0 0
    %1191 = vmatprep.subr.bf16.mxu0 0
    %1192 = vmatpush1.bf16.msra.mxu0 0
    %1193 = vmatprep.subr.bf16.mxu0 0
    %1194 = vmatpush1.bf16.msra.mxu0 0
    %1195 = vmatprep.subr.bf16.mxu0 0
    %1196 = vmatpush1.bf16.msra.mxu0 0
    %1197 = vmatprep.subr.bf16.mxu0 0
    %1198 = vmatpush1.bf16.msra.mxu0 0
    %1199 = vmatprep.subr.bf16.mxu0 0
    %1200 = vmatpush1.bf16.msra.mxu0 0
    %1201 = vmatprep.subr.bf16.mxu0 0
    %1202 = vmatpush1.bf16.msra.mxu0 0
    %1203 = vmatprep.subr.bf16.mxu0 0
    %1204 = vmatpush1.bf16.msra.mxu0 0
    %1205 = vmatprep.subr.bf16.mxu0 0
    %1206 = vmatpush1.bf16.msra.mxu0 0
    %1207 = vmatprep.mubr.bf16.mxu0 0
    %1208 = vmatmul.mubr.bf16.gmra.mrb[0].mxu0 %v1170
    %v1209 = vpop.f32.mrb[0].mxu0
    %v1210 = vadd.f32 0.0, %v1209
    %v1211 = vpop.f32.mrb[0].mxu0
    %v1212 = vpop.f32.mrb[0].mxu0
    %v1213 = vpop.f32.mrb[0].mxu0
    %1214 = vdwg.mxu0
    %1215 = vrot.lane.b32.xlu0 %v385, 32
    %v1216 = vpop.permute.xlu0 %1215
    %v1218 = vsel %vm479, %v1166, 0
    %v1221 = vsel %vm507, %v1216, 0
    %1223 = vmatprep.subr.bf16.mxu0 0
    %1224 = vmatpush1.bf16.msra.mxu0 %v1221
    %1225 = vmatprep.subr.bf16.mxu0 0
    %1226 = vmatpush1.bf16.msra.mxu0 0
    %1227 = vmatprep.subr.bf16.mxu0 0
    %1228 = vmatpush1.bf16.msra.mxu0 0
    %1229 = vmatprep.subr.bf16.mxu0 0
    %1230 = vmatpush1.bf16.msra.mxu0 0
    %1231 = vmatprep.subr.bf16.mxu0 0
    %1232 = vmatpush1.bf16.msra.mxu0 0
    %1233 = vmatprep.subr.bf16.mxu0 0
    %1234 = vmatpush1.bf16.msra.mxu0 0
    %1235 = vmatprep.subr.bf16.mxu0 0
    %1236 = vmatpush1.bf16.msra.mxu0 0
    %1237 = vmatprep.subr.bf16.mxu0 0
    %1238 = vmatpush1.bf16.msra.mxu0 0
    %1239 = vmatprep.subr.bf16.mxu0 0
    %1240 = vmatpush1.bf16.msra.mxu0 0
    %1241 = vmatprep.subr.bf16.mxu0 0
    %1242 = vmatpush1.bf16.msra.mxu0 0
    %1243 = vmatprep.subr.bf16.mxu0 0
    %1244 = vmatpush1.bf16.msra.mxu0 0
    %1245 = vmatprep.subr.bf16.mxu0 0
    %1246 = vmatpush1.bf16.msra.mxu0 0
    %1247 = vmatprep.subr.bf16.mxu0 0
    %1248 = vmatpush1.bf16.msra.mxu0 0
    %1249 = vmatprep.subr.bf16.mxu0 0
    %1250 = vmatpush1.bf16.msra.mxu0 0
    %1251 = vmatprep.subr.bf16.mxu0 0
    %1252 = vmatpush1.bf16.msra.mxu0 0
    %1253 = vmatprep.subr.bf16.mxu0 0
    %1254 = vmatpush1.bf16.msra.mxu0 0
    %1255 = vmatprep.mubr.bf16.mxu0 0
    %1256 = vmatmul.mubr.bf16.gmra.mrb[0].mxu0 %v1218
    %v1257 = vpop.f32.mrb[0].mxu0
    %v1258 = vadd.f32 0.0, %v1257
    %v1259 = vpop.f32.mrb[0].mxu0
    %v1260 = vpop.f32.mrb[0].mxu0
    %v1261 = vpop.f32.mrb[0].mxu0
    %1262 = vdwg.mxu0
    %1265 = vrot.lane.b32.xlu0 %v769, 32
    %v1266 = vpop.permute.xlu0 %1265
    %1267 = vrot.lane.b32.xlu0 %v818, 32
    %v1268 = vpop.permute.xlu0 %1267
    %1273 = vrot.lane.b32.xlu0 %v990, 64
    %v1274 = vpop.permute.xlu0 %1273
    %1275 = vrot.lane.b32.xlu0 %v1038, 64
    %v1276 = vpop.permute.xlu0 %1275
    %1281 = vrot.lane.b32.xlu0 %v1210, 96
    %v1282 = vpop.permute.xlu0 %1281
    %1283 = vrot.lane.b32.xlu0 %v1258, 96
    %v1284 = vpop.permute.xlu0 %1283
    %v1287 = vsel %vm386, %v546, %v1266
    %v1288 = vsel %vm386, %v592, %v1268
    %vm1289 = vcmask 523264
    %v1290 = vsel %vm1289, %v1287, %v1274
    %v1291 = vsel %vm1289, %v1288, %v1276
    %vm1292 = vcmask 785408
    %v1293 = vsel %vm1292, %v1290, %v1282
    %v1294 = vsel %vm1292, %v1291, %v1284
    %v1295 = vpack.c.bf16 %v1294, %v1293
    %v1296 = vld [vmem:[#allocation7] sm:$0xf]
    %v1297 = vld [vmem:[#allocation7 + $0x4] sm:$0xf]
    %v1298 = vld [vmem:[#allocation7 + $0x8] sm:$0xf]
    %v1299 = vld [vmem:[#allocation7 + $0xc] sm:$0xf]
    %v1300 = vld [vmem:[#allocation7 + $0x10] sm:$0xf]
    %v1301 = vld [vmem:[#allocation7 + $0x14] sm:$0xf]
    %v1302 = vld [vmem:[#allocation7 + $0x18] sm:$0xf]
    %v1303 = vld [vmem:[#allocation7 + $0x1c] sm:$0xf]
    %v1304 = vld [vmem:[#allocation7 + $0x20] sm:$0xf]
    %v1305 = vld [vmem:[#allocation7 + $0x24] sm:$0xf]
    %v1306 = vld [vmem:[#allocation7 + $0x28] sm:$0xf]
    %v1307 = vld [vmem:[#allocation7 + $0x2c] sm:$0xf]
    %v1308 = vld [vmem:[#allocation7 + $0x30] sm:$0xf]
    %v1309 = vld [vmem:[#allocation7 + $0x34] sm:$0xf]
    %v1310 = vld [vmem:[#allocation7 + $0x38] sm:$0xf]
    %v1311 = vld [vmem:[#allocation7 + $0x3c] sm:$0xf]
    %v1312 = vld [vmem:[%s6] sm:$0x1]
    %v1314 = vlaneseq
    %v1315 = vshrl.u32 %v1314, 7
    %v1316 = vsub.s32 0, %v1315
    %v1317 = vrot.slane %v1312, %v1316
    %v1335 = vunpack.c.l.b16 %v1296
    %v1336 = vunpack.c.l.b16 %v1297
    %v1337 = vunpack.c.l.b16 %v1298
    %v1338 = vunpack.c.l.b16 %v1299
    %v1339 = vunpack.c.l.b16 %v1300
    %v1340 = vunpack.c.l.b16 %v1301
    %v1341 = vunpack.c.l.b16 %v1302
    %v1342 = vunpack.c.l.b16 %v1303
    %v1343 = vunpack.c.l.b16 %v1304
    %v1344 = vunpack.c.l.b16 %v1305
    %v1345 = vunpack.c.l.b16 %v1306
    %v1346 = vunpack.c.l.b16 %v1307
    %v1347 = vunpack.c.l.b16 %v1308
    %v1348 = vunpack.c.l.b16 %v1309
    %v1349 = vunpack.c.l.b16 %v1310
    %v1350 = vunpack.c.l.b16 %v1311
    %v1351 = vpack.c.b16 %v1336, %v1335
    %v1352 = vpack.c.b16 %v1338, %v1337
    %v1353 = vpack.c.b16 %v1340, %v1339
    %v1354 = vpack.c.b16 %v1342, %v1341
    %v1355 = vpack.c.b16 %v1344, %v1343
    %v1356 = vpack.c.b16 %v1346, %v1345
    %v1357 = vpack.c.b16 %v1348, %v1347
    %v1358 = vpack.c.b16 %v1350, %v1349
    %1367 = vmatprep.subr.bf16.mxu0 0
    %1368 = vmatpush1.bf16.msra.mxu0 %v1351
    %1369 = vmatprep.subr.bf16.mxu0 0
    %1370 = vmatpush1.bf16.msra.mxu0 %v1352
    %1371 = vmatprep.subr.bf16.mxu0 0
    %1372 = vmatpush1.bf16.msra.mxu0 %v1353
    %1373 = vmatprep.subr.bf16.mxu0 0
    %1374 = vmatpush1.bf16.msra.mxu0 %v1354
    %1375 = vmatprep.subr.bf16.mxu0 0
    %1376 = vmatpush1.bf16.msra.mxu0 %v1355
    %1377 = vmatprep.subr.bf16.mxu0 0
    %1378 = vmatpush1.bf16.msra.mxu0 %v1356
    %1379 = vmatprep.subr.bf16.mxu0 0
    %1380 = vmatpush1.bf16.msra.mxu0 %v1357
    %1381 = vmatprep.subr.bf16.mxu0 0
    %1382 = vmatpush1.bf16.msra.mxu0 %v1358
    %1383 = vmatprep.subr.bf16.mxu0 0
    %1384 = vmatpush1.bf16.msra.mxu0 0
    %1385 = vmatprep.subr.bf16.mxu0 0
    %1386 = vmatpush1.bf16.msra.mxu0 0
    %1387 = vmatprep.subr.bf16.mxu0 0
    %1388 = vmatpush1.bf16.msra.mxu0 0
    %1389 = vmatprep.subr.bf16.mxu0 0
    %1390 = vmatpush1.bf16.msra.mxu0 0
    %1391 = vmatprep.subr.bf16.mxu0 0
    %1392 = vmatpush1.bf16.msra.mxu0 0
    %1393 = vmatprep.subr.bf16.mxu0 0
    %1394 = vmatpush1.bf16.msra.mxu0 0
    %1395 = vmatprep.subr.bf16.mxu0 0
    %1396 = vmatpush1.bf16.msra.mxu0 0
    %1397 = vmatprep.subr.bf16.mxu0 0
    %1398 = vmatpush1.bf16.msra.mxu0 0
    %1399 = vmatprep.mubr.bf16.mxu0 0
    %1400 = vmatmul.mubr.bf16.gmra.mrb[0].mxu0 %v1295
    %v1401 = vpop.f32.mrb[0].mxu0
    %v1402 = vadd.f32 %v1317, %v1401
    %v1403 = vpop.f32.mrb[0].mxu0
    %v1404 = vpop.f32.mrb[0].mxu0
    %v1405 = vadd.f32 %v1317, %v1404
    %v1406 = vpop.f32.mrb[0].mxu0
    %1407 = vdwg.mxu0
    %v1408 = vadd.f32 %v1402, %v69
    %v1409 = vadd.f32 %v1405, %v70
    %1410 = vst [vmem:[#allocation8] sm:$0xff] %v1408
    %1411 = vst [vmem:[#allocation8 + $0x8] sm:$0xff] %v1409
    // Predicated region
    $region42: #{tpu_custom_call.1} parent=1 // pred_check
      _
    $region43: #{tpu_custom_call.1} parent=1 // pred_check_branch
      %1413 = sbr.rel (0) target = $region45
    $region44: #{tpu_custom_call.1} parent=1 // pred_region
      %s1415 = ssub.s32 256, 256
      %1416 = vsyncadd [#allocation4], %s1415
      %s1417 = sshll.u32 [#allocation8], 4
      %s1418 = int_to_ptr.vmem [resolvable:$true] %s1417
      %1423 = dma.vmem_to_hbm [thread:$0]  %s1418, 256, %s7, [#allocation4], 128, 128, 8
    $region45: #{tpu_custom_call.1} parent=1 // pred_fallthru
      _
    // Predicated region
    $region46: #{tpu_custom_call.1} parent=1 // pred_check
      _
    $region47: #{tpu_custom_call.1} parent=1 // pred_check_branch
      %1425 = sbr.rel (0) target = $region49
    $region48: #{tpu_custom_call.1} parent=1 // pred_region
      %1426 = dma.done [#allocation4], 256
    $region49: #{tpu_custom_call.1} parent=1 // pred_fallthru
      _
    %1427 = vsyncpa [#allocation3], 1
    %1428 = vsyncpa [#allocation6], 1
    %1429 = vsyncpa [#allocation4], 1

</llo_original>
